<compile_context>
chip_gen: v7x
topology: tpu7x:2x2x1
jax: 0.10.0
libtpu: 0.0.40
codegen_flags: <defaults>
</compile_context>

<pallas_src>
import jax
import jax.numpy as jnp
from jax.experimental import pallas as pl


def decoder_step_kernel(
    tok_ref, h_ref, ann_ref, emb_ref,
    wah_ref, waa_ref, ba1_ref, wa2_ref,
    wgx_ref, wgh_ref, bgh_ref,
    wout_ref, bout_ref,
    logits_ref, hnew_ref, attn_ref,
):
    B, H = h_ref.shape
    S = ann_ref.shape[1]
    V = emb_ref.shape[0]

    h = h_ref[...].astype(jnp.float32)            # (B, H)
    ann = ann_ref[...].astype(jnp.float32)        # (B, S, H)

    # ---- Embedding lookup: one_hot(tokens) @ table (MXU-friendly gather) ----
    tok = tok_ref[...]                                            # (B, 1) int32
    onehot = (jax.lax.broadcasted_iota(jnp.int32, (B, V), 1) == tok)
    embed = jnp.dot(onehot.astype(jnp.float32),
                    emb_ref[...].astype(jnp.float32),
                    preferred_element_type=jnp.float32)           # (B, H)

    # ---- Attention: softmax_S( W2 @ relu(W1 [h ; ann] + b1) ) ---------------
    # W1 is split into its hidden / annotation halves so the concat is never
    # materialized: W1 [h;a] = h @ W1_h + a @ W1_a.
    h_proj = jnp.dot(h, wah_ref[...], preferred_element_type=jnp.float32)     # (B, H)
    a_proj = jnp.dot(ann.reshape(B * S, H), waa_ref[...],
                     preferred_element_type=jnp.float32).reshape(B, S, H)
    hid = jnp.maximum(a_proj + h_proj[:, None, :] + ba1_ref[...], 0.0)        # ReLU
    # Second linear (H -> 1) as a lane reduction -> lane-dense (B, S) scores.
    # (Its scalar bias is omitted: softmax is invariant to a constant shift.)
    scores = jnp.sum(hid * wa2_ref[...], axis=-1)                              # (B, S)
    scores = scores - jnp.max(scores, axis=-1, keepdims=True)
    e = jnp.exp(scores)
    attn = e / jnp.sum(e, axis=-1, keepdims=True)                              # (B, S)
    attn_ref[...] = attn.astype(attn_ref.dtype)

    # ---- context = attn^T @ annotations (batched matmul) --------------------
    context = jnp.einsum('bqs,bsh->bqh', attn[:, None, :], ann,
                         preferred_element_type=jnp.float32).reshape(B, H)

    # ---- MyGRUCell with fused [z | r | n] gate slabs -------------------------
    xh = jnp.concatenate([context, embed], axis=1)                             # (B, 2H)
    gx = jnp.dot(xh, wgx_ref[...], preferred_element_type=jnp.float32)         # (B, 3H)
    gh = jnp.dot(h, wgh_ref[...], preferred_element_type=jnp.float32) + bgh_ref[...]
    z = jax.nn.sigmoid(gx[:, 0:H] + gh[:, 0:H])
    r = jax.nn.sigmoid(gx[:, H:2 * H] + gh[:, H:2 * H])
    g = jnp.tanh(gx[:, 2 * H:3 * H] + r * gh[:, 2 * H:3 * H])
    h_new = (1.0 - z) * g + z * h
    hnew_ref[...] = h_new.astype(hnew_ref.dtype)

    # ---- Output projection ---------------------------------------------------
    logits = jnp.dot(h_new, wout_ref[...],
                     preferred_element_type=jnp.float32) + bout_ref[...]
    logits_ref[...] = logits.astype(logits_ref.dtype)


@jax.jit
def attention_decoder_step(tokens, h_prev, annotations, params):
    """One AttentionDecoder step.

    tokens: (B, 1) int32, h_prev: (B, H), annotations: (B, S, H)
    Returns (logits (B, V), h_new (B, H), attention_weights (B, S, 1)).
    """
    (emb, wah, waa, ba1, wa2, _ba2, wgx, wgh, bgh, wout, bout) = params
    B, S, H = annotations.shape
    V = emb.shape[0]

    full = lambda shape: pl.BlockSpec(shape, lambda: (0,) * len(shape))

    logits, h_new, attn = pl.pallas_call(
        decoder_step_kernel,
        grid=(),
        out_shape=(
            jax.ShapeDtypeStruct((B, V), jnp.float32),
            jax.ShapeDtypeStruct((B, H), jnp.float32),
            jax.ShapeDtypeStruct((B, S), jnp.float32),
        ),
        in_specs=[
            full((B, 1)), full((B, H)), full((B, S, H)), full((V, H)),
            full((H, H)), full((H, H)), full((1, H)), full((1, H)),
            full((2 * H, 3 * H)), full((H, 3 * H)), full((1, 3 * H)),
            full((H, V)), full((1, V)),
        ],
        out_specs=(full((B, V)), full((B, H)), full((B, S))),
        # Reuse h_prev's HBM buffer for h_new (state update in place).
        input_output_aliases={1: 1},
    )(tokens, h_prev, annotations, emb, wah, waa, ba1, wa2,
      wgx, wgh, bgh, wout, bout)
    return logits, h_new, attn.reshape(B, S, 1)


def init_params(key, vocab_size, hidden_size, dtype=jnp.float32):
    """Deterministic init mimicking nn.Linear / nn.Embedding defaults.

    All weights already transposed to [in, out]; GRU gates packed [z | r | n].
    """
    H, V = hidden_size, vocab_size
    keys = jax.random.split(key, 11)

    def uni(k, shape, fan_in):
        lim = 1.0 / jnp.sqrt(jnp.asarray(fan_in, jnp.float32))
        return jax.random.uniform(k, shape, dtype, -lim, lim)

    emb = jax.random.normal(keys[0], (V, H), dtype)        # nn.Embedding ~ N(0,1)

    # Attention: Linear(2H -> H) split into hidden / annotation halves.
    wah = uni(keys[1], (H, H), 2 * H)
    waa = uni(keys[2], (H, H), 2 * H)
    ba1 = uni(keys[3], (1, H), 2 * H)
    wa2 = uni(keys[4], (1, H), H)      # Linear(H -> 1) weight, stored as a row
    ba2 = uni(keys[5], (1, 1), H)      # its bias (cancels under softmax)

    # MyGRUCell: fused gate slabs, input_size = 2H.
    wgx = uni(keys[6], (2 * H, 3 * H), 2 * H)   # [Wiz | Wir | Win]
    wgh = uni(keys[7], (H, 3 * H), H)           # [Whz | Whr | Whn]
    bgh = uni(keys[8], (1, 3 * H), H)           # [bhz | bhr | bhn]

    # Output projection Linear(H -> V).
    wout = uni(keys[9], (H, V), H)
    bout = uni(keys[10], (1, V), H)
    return (emb, wah, waa, ba1, wa2, ba2, wgx, wgh, bgh, wout, bout)


def attention_decoder_ref(tokens, h_prev, annotations, params):
    """Pure-JAX reference mirroring the PyTorch AttentionDecoder.forward."""
    emb, wah, waa, ba1, wa2, ba2, wgx, wgh, bgh, wout, bout = params
    B, S, H = annotations.shape

    embed = emb[tokens[:, 0]]                                        # (B, H)

    # Attention
    expanded = jnp.broadcast_to(h_prev[:, None, :], (B, S, H))
    concat = jnp.concatenate([expanded, annotations], axis=2).reshape(B * S, 2 * H)
    w1 = jnp.concatenate([wah, waa], axis=0)                         # (2H, H)
    hid = jax.nn.relu(concat @ w1 + ba1)
    scores = (hid @ wa2.T + ba2).reshape(B, S, 1)
    attn = jax.nn.softmax(scores, axis=1)                            # (B, S, 1)

    context = jnp.matmul(jnp.swapaxes(attn, 1, 2), annotations)[:, 0, :]  # (B, H)

    # GRU cell
    x = jnp.concatenate([context, embed], axis=1)                    # (B, 2H)
    gx = x @ wgx
    gh = h_prev @ wgh + bgh
    z = jax.nn.sigmoid(gx[:, :H] + gh[:, :H])
    r = jax.nn.sigmoid(gx[:, H:2 * H] + gh[:, H:2 * H])
    g = jnp.tanh(gx[:, 2 * H:] + r * gh[:, 2 * H:])
    h_new = (1.0 - z) * g + z * h_prev

    logits = h_new @ wout + bout
    return logits, h_new, attn


if __name__ == "__main__":
    batch, seq_len, hidden_size, vocab_size = 8, 16, 64, 128

    key = jax.random.PRNGKey(0)
    kt, kh, ka, kp = jax.random.split(key, 4)

    tokens = jax.random.randint(kt, (batch, 1), 0, vocab_size, jnp.int32)
    h_prev = jax.random.normal(kh, (batch, hidden_size), jnp.float32)
    annotations = jax.random.normal(ka, (batch, seq_len, hidden_size), jnp.float32)
    params = init_params(kp, vocab_size, hidden_size)

    logits, h_new, attn = attention_decoder_step(tokens, h_prev, annotations, params)
    jax.block_until_ready((logits, h_new, attn))

    logits_ref, h_ref, attn_w_ref = attention_decoder_ref(tokens, h_prev, annotations, params)

    assert logits.shape == (batch, vocab_size)
    assert h_new.shape == (batch, hidden_size)
    assert attn.shape == (batch, seq_len, 1)
    assert jnp.allclose(attn, attn_w_ref, atol=1e-4, rtol=1e-4)
    assert jnp.allclose(h_new, h_ref, atol=1e-4, rtol=1e-4)
    assert jnp.allclose(logits, logits_ref, atol=1e-4, rtol=1e-4)

    print("KERNEL_OK")
</pallas_src>

<mosaic_0001>
module attributes {stable_mosaic.version = 11 : i64} {
  func.func @decoder_step_kernel(%arg0: memref<8x1xi32, #tpu.memory_space<vmem>>, %arg1: memref<8x64xf32, #tpu.memory_space<vmem>>, %arg2: memref<8x16x64xf32, #tpu.memory_space<vmem>>, %arg3: memref<128x64xf32, #tpu.memory_space<vmem>>, %arg4: memref<64x64xf32, #tpu.memory_space<vmem>>, %arg5: memref<64x64xf32, #tpu.memory_space<vmem>>, %arg6: memref<1x64xf32, #tpu.memory_space<vmem>>, %arg7: memref<1x64xf32, #tpu.memory_space<vmem>>, %arg8: memref<128x192xf32, #tpu.memory_space<vmem>>, %arg9: memref<64x192xf32, #tpu.memory_space<vmem>>, %arg10: memref<1x192xf32, #tpu.memory_space<vmem>>, %arg11: memref<64x128xf32, #tpu.memory_space<vmem>>, %arg12: memref<1x128xf32, #tpu.memory_space<vmem>>, %arg13: memref<8x128xf32, #tpu.memory_space<vmem>>, %arg14: memref<8x64xf32, #tpu.memory_space<vmem>>, %arg15: memref<8x16xf32, #tpu.memory_space<vmem>>) attributes {dimension_semantics = [], scalar_prefetch = 0 : i64, scratch_operands = 0 : i64, tpu.core_type = #tpu.core_type<tc>} {
    %c0 = arith.constant 0 : index
    %c0_0 = arith.constant 0 : index
    %0 = vector.load %arg1[%c0, %c0_0] : memref<8x64xf32, #tpu.memory_space<vmem>>, vector<8x64xf32>
    %c0_1 = arith.constant 0 : index
    %c0_2 = arith.constant 0 : index
    %c0_3 = arith.constant 0 : index
    %1 = vector.load %arg2[%c0_1, %c0_2, %c0_3] : memref<8x16x64xf32, #tpu.memory_space<vmem>>, vector<8x16x64xf32>
    %c0_4 = arith.constant 0 : index
    %c0_5 = arith.constant 0 : index
    %2 = vector.load %arg0[%c0_4, %c0_5] : memref<8x1xi32, #tpu.memory_space<vmem>>, vector<8x1xi32>
    %3 = tpu.iota {dimensions = array<i32: 1>} : vector<8x128xi32>
    %4 = vector.broadcast %2 : vector<8x1xi32> to vector<8x128xi32>
    %5 = arith.cmpi eq, %3, %4 : vector<8x128xi32>
    %6 = arith.extui %5 : vector<8x128xi1> to vector<8x128xi32>
    %7 = arith.sitofp %6 : vector<8x128xi32> to vector<8x128xf32>
    %c0_6 = arith.constant 0 : index
    %c0_7 = arith.constant 0 : index
    %8 = vector.load %arg3[%c0_6, %c0_7] : memref<128x64xf32, #tpu.memory_space<vmem>>, vector<128x64xf32>
    %cst = arith.constant dense<0.000000e+00> : vector<8x64xf32>
    %9 = tpu.matmul %7, %8, %cst {dimension_numbers = #tpu.dot_dimension_numbers<[1], [0], [0], [1], [0, 0, 1, 1], [], []>} : vector<8x128xf32>, vector<128x64xf32>, vector<8x64xf32> -> vector<8x64xf32>
    %c0_8 = arith.constant 0 : index
    %c0_9 = arith.constant 0 : index
    %10 = vector.load %arg4[%c0_8, %c0_9] : memref<64x64xf32, #tpu.memory_space<vmem>>, vector<64x64xf32>
    %cst_10 = arith.constant dense<0.000000e+00> : vector<8x64xf32>
    %11 = tpu.matmul %0, %10, %cst_10 {dimension_numbers = #tpu.dot_dimension_numbers<[1], [0], [0], [1], [0, 0, 1, 1], [], []>} : vector<8x64xf32>, vector<64x64xf32>, vector<8x64xf32> -> vector<8x64xf32>
    %12 = vector.shape_cast %1 : vector<8x16x64xf32> to vector<128x64xf32>
    %c0_11 = arith.constant 0 : index
    %c0_12 = arith.constant 0 : index
    %13 = vector.load %arg5[%c0_11, %c0_12] : memref<64x64xf32, #tpu.memory_space<vmem>>, vector<64x64xf32>
    %cst_13 = arith.constant dense<0.000000e+00> : vector<128x64xf32>
    %14 = tpu.matmul %12, %13, %cst_13 {dimension_numbers = #tpu.dot_dimension_numbers<[1], [0], [0], [1], [0, 0, 1, 1], [], []>} : vector<128x64xf32>, vector<64x64xf32>, vector<128x64xf32> -> vector<128x64xf32>
    %15 = vector.shape_cast %14 : vector<128x64xf32> to vector<8x16x64xf32>
    %16 = vector.shape_cast %11 : vector<8x64xf32> to vector<8x1x64xf32>
    %17 = vector.broadcast %16 : vector<8x1x64xf32> to vector<8x16x64xf32>
    %18 = arith.addf %15, %17 : vector<8x16x64xf32>
    %c0_14 = arith.constant 0 : index
    %c0_15 = arith.constant 0 : index
    %19 = vector.load %arg6[%c0_14, %c0_15] : memref<1x64xf32, #tpu.memory_space<vmem>>, vector<1x64xf32>
    %20 = vector.shape_cast %19 : vector<1x64xf32> to vector<1x1x64xf32>
    %21 = vector.broadcast %20 : vector<1x1x64xf32> to vector<8x16x64xf32>
    %22 = arith.addf %18, %21 : vector<8x16x64xf32>
    %cst_16 = arith.constant 0.000000e+00 : f32
    %23 = vector.broadcast %cst_16 : f32 to vector<8x16x64xf32>
    %24 = arith.maximumf %22, %23 : vector<8x16x64xf32>
    %c0_17 = arith.constant 0 : index
    %c0_18 = arith.constant 0 : index
    %25 = vector.load %arg7[%c0_17, %c0_18] : memref<1x64xf32, #tpu.memory_space<vmem>>, vector<1x64xf32>
    %26 = vector.shape_cast %25 : vector<1x64xf32> to vector<1x1x64xf32>
    %27 = vector.broadcast %26 : vector<1x1x64xf32> to vector<8x16x64xf32>
    %28 = arith.mulf %24, %27 : vector<8x16x64xf32>
    %cst_19 = arith.constant dense<0.000000e+00> : vector<8x16xf32>
    %29 = vector.multi_reduction <add>, %28, %cst_19 [2] : vector<8x16x64xf32> to vector<8x16xf32>
    %cst_20 = arith.constant dense<0xFF800000> : vector<8xf32>
    %30 = vector.multi_reduction <maximumf>, %29, %cst_20 [1] : vector<8x16xf32> to vector<8xf32>
    %31 = vector.shape_cast %30 : vector<8xf32> to vector<8x1xf32>
    %32 = vector.broadcast %31 : vector<8x1xf32> to vector<8x16xf32>
    %33 = arith.subf %29, %32 : vector<8x16xf32>
    %34 = math.exp %33 : vector<8x16xf32>
    %cst_21 = arith.constant dense<0.000000e+00> : vector<8xf32>
    %35 = vector.multi_reduction <add>, %34, %cst_21 [1] : vector<8x16xf32> to vector<8xf32>
    %36 = vector.shape_cast %35 : vector<8xf32> to vector<8x1xf32>
    %37 = vector.broadcast %36 : vector<8x1xf32> to vector<8x16xf32>
    %38 = arith.divf %34, %37 : vector<8x16xf32>
    %c0_22 = arith.constant 0 : index
    %c0_23 = arith.constant 0 : index
    %39 = vector.load %arg15[%c0_22, %c0_23] : memref<8x16xf32, #tpu.memory_space<vmem>>, vector<8x16xf32>
    tpu.vector_store %arg15[%c0_22, %c0_23], %38 {strides = array<i32>} : memref<8x16xf32, #tpu.memory_space<vmem>>, vector<8x16xf32>,
    %40 = vector.shape_cast %38 : vector<8x16xf32> to vector<8x1x16xf32>
    "tpu.trace_start"() <{level = 10 : i32, message = "bqs,bsh->bqh"}> : () -> ()
    %cst_24 = arith.constant dense<0.000000e+00> : vector<8x1x64xf32>
    %41 = tpu.matmul %40, %1, %cst_24 {dimension_numbers = #tpu.dot_dimension_numbers<[2], [1], [1], [2], [0, 0, 0, 1, 1, 2], [0], [0]>} : vector<8x1x16xf32>, vector<8x16x64xf32>, vector<8x1x64xf32> -> vector<8x1x64xf32>
    "tpu.trace_stop"() : () -> ()
    %42 = vector.shape_cast %41 : vector<8x1x64xf32> to vector<8x64xf32>
    %43 = tpu.concatenate %42, %9 in 1 : vector<8x64xf32>, vector<8x64xf32> -> vector<8x128xf32>
    %c0_25 = arith.constant 0 : index
    %c0_26 = arith.constant 0 : index
    %44 = vector.load %arg8[%c0_25, %c0_26] : memref<128x192xf32, #tpu.memory_space<vmem>>, vector<128x192xf32>
    %cst_27 = arith.constant dense<0.000000e+00> : vector<8x192xf32>
    %45 = tpu.matmul %43, %44, %cst_27 {dimension_numbers = #tpu.dot_dimension_numbers<[1], [0], [0], [1], [0, 0, 1, 1], [], []>} : vector<8x128xf32>, vector<128x192xf32>, vector<8x192xf32> -> vector<8x192xf32>
    %c0_28 = arith.constant 0 : index
    %c0_29 = arith.constant 0 : index
    %46 = vector.load %arg9[%c0_28, %c0_29] : memref<64x192xf32, #tpu.memory_space<vmem>>, vector<64x192xf32>
    %cst_30 = arith.constant dense<0.000000e+00> : vector<8x192xf32>
    %47 = tpu.matmul %0, %46, %cst_30 {dimension_numbers = #tpu.dot_dimension_numbers<[1], [0], [0], [1], [0, 0, 1, 1], [], []>} : vector<8x64xf32>, vector<64x192xf32>, vector<8x192xf32> -> vector<8x192xf32>
    %c0_31 = arith.constant 0 : index
    %c0_32 = arith.constant 0 : index
    %48 = vector.load %arg10[%c0_31, %c0_32] : memref<1x192xf32, #tpu.memory_space<vmem>>, vector<1x192xf32>
    %49 = vector.broadcast %48 : vector<1x192xf32> to vector<8x192xf32>
    %50 = arith.addf %47, %49 : vector<8x192xf32>
    %51 = vector.extract_strided_slice %45 {offsets = [0, 0], sizes = [8, 64], strides = [1, 1]} : vector<8x192xf32> to vector<8x64xf32>
    %52 = vector.extract_strided_slice %50 {offsets = [0, 0], sizes = [8, 64], strides = [1, 1]} : vector<8x192xf32> to vector<8x64xf32>
    %53 = arith.addf %51, %52 : vector<8x64xf32>
    %54 = arith.negf %53 : vector<8x64xf32>
    %55 = math.exp %54 : vector<8x64xf32>
    %cst_33 = arith.constant 1.000000e+00 : f32
    %56 = vector.broadcast %cst_33 : f32 to vector<8x64xf32>
    %57 = arith.addf %56, %55 : vector<8x64xf32>
    %58 = arith.divf %56, %57 : vector<8x64xf32>
    %59 = vector.extract_strided_slice %45 {offsets = [0, 64], sizes = [8, 64], strides = [1, 1]} : vector<8x192xf32> to vector<8x64xf32>
    %60 = vector.extract_strided_slice %50 {offsets = [0, 64], sizes = [8, 64], strides = [1, 1]} : vector<8x192xf32> to vector<8x64xf32>
    %61 = arith.addf %59, %60 : vector<8x64xf32>
    %62 = arith.negf %61 : vector<8x64xf32>
    %63 = math.exp %62 : vector<8x64xf32>
    %cst_34 = arith.constant 1.000000e+00 : f32
    %64 = vector.broadcast %cst_34 : f32 to vector<8x64xf32>
    %65 = arith.addf %64, %63 : vector<8x64xf32>
    %66 = arith.divf %64, %65 : vector<8x64xf32>
    %67 = vector.extract_strided_slice %45 {offsets = [0, 128], sizes = [8, 64], strides = [1, 1]} : vector<8x192xf32> to vector<8x64xf32>
    %68 = vector.extract_strided_slice %50 {offsets = [0, 128], sizes = [8, 64], strides = [1, 1]} : vector<8x192xf32> to vector<8x64xf32>
    %69 = arith.mulf %66, %68 : vector<8x64xf32>
    %70 = arith.addf %67, %69 : vector<8x64xf32>
    %71 = math.tanh %70 : vector<8x64xf32>
    %cst_35 = arith.constant 1.000000e+00 : f32
    %72 = vector.broadcast %cst_35 : f32 to vector<8x64xf32>
    %73 = arith.subf %72, %58 : vector<8x64xf32>
    %74 = arith.mulf %73, %71 : vector<8x64xf32>
    %75 = arith.mulf %58, %0 : vector<8x64xf32>
    %76 = arith.addf %74, %75 : vector<8x64xf32>
    %c0_36 = arith.constant 0 : index
    %c0_37 = arith.constant 0 : index
    %77 = vector.load %arg14[%c0_36, %c0_37] : memref<8x64xf32, #tpu.memory_space<vmem>>, vector<8x64xf32>
    tpu.vector_store %arg14[%c0_36, %c0_37], %76 {strides = array<i32>} : memref<8x64xf32, #tpu.memory_space<vmem>>, vector<8x64xf32>,
    %c0_38 = arith.constant 0 : index
    %c0_39 = arith.constant 0 : index
    %78 = vector.load %arg11[%c0_38, %c0_39] : memref<64x128xf32, #tpu.memory_space<vmem>>, vector<64x128xf32>
    %cst_40 = arith.constant dense<0.000000e+00> : vector<8x128xf32>
    %79 = tpu.matmul %76, %78, %cst_40 {dimension_numbers = #tpu.dot_dimension_numbers<[1], [0], [0], [1], [0, 0, 1, 1], [], []>} : vector<8x64xf32>, vector<64x128xf32>, vector<8x128xf32> -> vector<8x128xf32>
    %c0_41 = arith.constant 0 : index
    %c0_42 = arith.constant 0 : index
    %80 = vector.load %arg12[%c0_41, %c0_42] : memref<1x128xf32, #tpu.memory_space<vmem>>, vector<1x128xf32>
    %81 = vector.broadcast %80 : vector<1x128xf32> to vector<8x128xf32>
    %82 = arith.addf %79, %81 : vector<8x128xf32>
    %c0_43 = arith.constant 0 : index
    %c0_44 = arith.constant 0 : index
    %83 = vector.load %arg13[%c0_43, %c0_44] : memref<8x128xf32, #tpu.memory_space<vmem>>, vector<8x128xf32>
    tpu.vector_store %arg13[%c0_43, %c0_44], %82 {strides = array<i32>} : memref<8x128xf32, #tpu.memory_space<vmem>>, vector<8x128xf32>,
    return
  }
}

</mosaic_0001>

<llo_original>
// kernel: attention_decoder_step.1
$region0: #{attention_decoder_step.1}
  #allocation0 [shape = 'u32[]', space=smem, size = 0x4, offset = 0x4, fixed_abs, tag = 'smem constant byte address 0x4 - core index']
  #allocation1 [shape = 'u32[144,128]{1,0:T(1,128)}', space=vmem, size = 0x12000, scoped, tag = 'internal scratch']
  %s0 = inlined_call_operand.vmem [shape: s32[8,1], index: 0, kind: input, shape index: {}]
  %s1 = inlined_call_operand.vmem [shape: f32[8,64], index: 1, kind: input, shape index: {}, may-alias: {1,14}]
  %s2 = inlined_call_operand.vmem [shape: f32[8,16,64], index: 2, kind: input, shape index: {}]
  %s3 = inlined_call_operand.vmem [shape: f32[128,64], index: 3, kind: input, shape index: {}]
  %s4 = inlined_call_operand.vmem [shape: f32[64,64], index: 4, kind: input, shape index: {}]
  %s5 = inlined_call_operand.vmem [shape: f32[64,64], index: 5, kind: input, shape index: {}]
  %s6 = inlined_call_operand.vmem [shape: f32[1,64], index: 6, kind: input, shape index: {}]
  %s7 = inlined_call_operand.vmem [shape: f32[1,64], index: 7, kind: input, shape index: {}]
  %s8 = inlined_call_operand.vmem [shape: f32[128,192], index: 8, kind: input, shape index: {}]
  %s9 = inlined_call_operand.vmem [shape: f32[64,192], index: 9, kind: input, shape index: {}]
  %s10 = inlined_call_operand.vmem [shape: f32[1,192], index: 10, kind: input, shape index: {}]
  %s11 = inlined_call_operand.vmem [shape: f32[64,128], index: 11, kind: input, shape index: {}]
  %s12 = inlined_call_operand.vmem [shape: f32[1,128], index: 12, kind: input, shape index: {}]
  %s13 = inlined_call_operand.hbm [shape: f32[8,128], index: 13, kind: output, shape index: {0}]
  %s14 = inlined_call_operand.vmem [shape: f32[8,64], index: 14, kind: output, shape index: {1}, may-alias: {1,14}]
  %s15 = inlined_call_operand.hbm [shape: f32[8,16], index: 15, kind: output, shape index: {2}]
  %16 = xla_tuple %s13, %s14, %s15
  %s17 = sld [smem:[#allocation0]]
  $region78: #{attention_decoder_step.1} parent=0
    _
  %s19 = ssub.s32 1, %s17
  %s20 = scalar_select 0, %s19, %s17
  $region1: #{attention_decoder_step.1} parent=0
    #allocation2 [shape = 'u8[4096]{0}', space=vmem, size = 0x1000, scoped, tag = 'output window, operand 0, single buffered']
    #allocation3 [shape = 's32[1]{0}', space=sflag, size = 0x4, scoped, tag = 'scoped memory for attention_decoder_step.1']
    #allocation4 [shape = 'u8[4096]{0}', space=vmem, size = 0x1000, scoped, tag = 'output window, operand 2, single buffered']
    #allocation5 [shape = 's32[1]{0}', space=sflag, size = 0x4, scoped, tag = 'scoped memory for attention_decoder_step.1']
    %21 = vsyncpa [#allocation3], 0
    %22 = vsyncpa [#allocation5], 0
    // Predicated region
    $region2: #{attention_decoder_step.1} parent=1 // pred_check
      _
    $region3: #{attention_decoder_step.1} parent=1 // pred_check_branch
      %24 = sbr.rel (0) target = $region5
    $region4: #{attention_decoder_step.1} parent=1 // pred_region
      _
    $region5: #{attention_decoder_step.1} parent=1 // pred_fallthru
      _
    // Predicated region
    $region6: #{attention_decoder_step.1} parent=1 // pred_check
      _
    $region7: #{attention_decoder_step.1} parent=1 // pred_check_branch
      %26 = sbr.rel (0) target = $region9
    $region8: #{attention_decoder_step.1} parent=1 // pred_region
      _
    $region9: #{attention_decoder_step.1} parent=1 // pred_fallthru
      _
    // Predicated region
    $region10: #{attention_decoder_step.1} parent=1 // pred_check
      _
    $region11: #{attention_decoder_step.1} parent=1 // pred_check_branch
      %28 = sbr.rel (0) target = $region13
    $region12: #{attention_decoder_step.1} parent=1 // pred_region
      _
    $region13: #{attention_decoder_step.1} parent=1 // pred_fallthru
      _
    // Predicated region
    $region14: #{attention_decoder_step.1} parent=1 // pred_check
      _
    $region15: #{attention_decoder_step.1} parent=1 // pred_check_branch
      %30 = sbr.rel (0) target = $region17
    $region16: #{attention_decoder_step.1} parent=1 // pred_region
      _
    $region17: #{attention_decoder_step.1} parent=1 // pred_fallthru
      _
    // Predicated region
    $region18: #{attention_decoder_step.1} parent=1 // pred_check
      _
    $region19: #{attention_decoder_step.1} parent=1 // pred_check_branch
      %32 = sbr.rel (0) target = $region21
    $region20: #{attention_decoder_step.1} parent=1 // pred_region
      _
    $region21: #{attention_decoder_step.1} parent=1 // pred_fallthru
      _
    // Predicated region
    $region22: #{attention_decoder_step.1} parent=1 // pred_check
      _
    $region23: #{attention_decoder_step.1} parent=1 // pred_check_branch
      %34 = sbr.rel (0) target = $region25
    $region24: #{attention_decoder_step.1} parent=1 // pred_region
      _
    $region25: #{attention_decoder_step.1} parent=1 // pred_fallthru
      _
    // Predicated region
    $region26: #{attention_decoder_step.1} parent=1 // pred_check
      _
    $region27: #{attention_decoder_step.1} parent=1 // pred_check_branch
      %36 = sbr.rel (0) target = $region29
    $region28: #{attention_decoder_step.1} parent=1 // pred_region
      _
    $region29: #{attention_decoder_step.1} parent=1 // pred_fallthru
      _
    // Predicated region
    $region30: #{attention_decoder_step.1} parent=1 // pred_check
      _
    $region31: #{attention_decoder_step.1} parent=1 // pred_check_branch
      %38 = sbr.rel (0) target = $region33
    $region32: #{attention_decoder_step.1} parent=1 // pred_region
      _
    $region33: #{attention_decoder_step.1} parent=1 // pred_fallthru
      _
    // Predicated region
    $region34: #{attention_decoder_step.1} parent=1 // pred_check
      _
    $region35: #{attention_decoder_step.1} parent=1 // pred_check_branch
      %40 = sbr.rel (0) target = $region37
    $region36: #{attention_decoder_step.1} parent=1 // pred_region
      _
    $region37: #{attention_decoder_step.1} parent=1 // pred_fallthru
      _
    // Predicated region
    $region38: #{attention_decoder_step.1} parent=1 // pred_check
      _
    $region39: #{attention_decoder_step.1} parent=1 // pred_check_branch
      %42 = sbr.rel (0) target = $region41
    $region40: #{attention_decoder_step.1} parent=1 // pred_region
      _
    $region41: #{attention_decoder_step.1} parent=1 // pred_fallthru
      _
    // Predicated region
    $region42: #{attention_decoder_step.1} parent=1 // pred_check
      _
    $region43: #{attention_decoder_step.1} parent=1 // pred_check_branch
      %44 = sbr.rel (0) target = $region45
    $region44: #{attention_decoder_step.1} parent=1 // pred_region
      _
    $region45: #{attention_decoder_step.1} parent=1 // pred_fallthru
      _
    // Predicated region
    $region46: #{attention_decoder_step.1} parent=1 // pred_check
      _
    $region47: #{attention_decoder_step.1} parent=1 // pred_check_branch
      %46 = sbr.rel (0) target = $region49
    $region48: #{attention_decoder_step.1} parent=1 // pred_region
      _
    $region49: #{attention_decoder_step.1} parent=1 // pred_fallthru
      _
    // Predicated region
    $region50: #{attention_decoder_step.1} parent=1 // pred_check
      _
    $region51: #{attention_decoder_step.1} parent=1 // pred_check_branch
      %48 = sbr.rel (0) target = $region53
    $region52: #{attention_decoder_step.1} parent=1 // pred_region
      _
    $region53: #{attention_decoder_step.1} parent=1 // pred_fallthru
      _
    %v49 = vld [vmem:[%s1] sm:$0xff]
    %v50 = vld [vmem:[%s2] sm:$0xff]
    %v51 = vld [vmem:[%s2 + $0x8] sm:$0xff]
    %v52 = vld [vmem:[%s2 + $0x10] sm:$0xff]
    %v53 = vld [vmem:[%s2 + $0x18] sm:$0xff]
    %v54 = vld [vmem:[%s2 + $0x20] sm:$0xff]
    %v55 = vld [vmem:[%s2 + $0x28] sm:$0xff]
    %v56 = vld [vmem:[%s2 + $0x30] sm:$0xff]
    %v57 = vld [vmem:[%s2 + $0x38] sm:$0xff]
    %v58 = vld [vmem:[%s2 + $0x40] sm:$0xff]
    %v59 = vld [vmem:[%s2 + $0x48] sm:$0xff]
    %v60 = vld [vmem:[%s2 + $0x50] sm:$0xff]
    %v61 = vld [vmem:[%s2 + $0x58] sm:$0xff]
    %v62 = vld [vmem:[%s2 + $0x60] sm:$0xff]
    %v63 = vld [vmem:[%s2 + $0x68] sm:$0xff]
    %v64 = vld [vmem:[%s2 + $0x70] sm:$0xff]
    %v65 = vld [vmem:[%s2 + $0x78] sm:$0xff]
    %v66 = vld [vmem:[%s0] sm:$0xff]
    %v67 = vlaneseq
    %v68 = vand.u32 %v67, 127
    %69 = vset.pattern.permute.xlu0 0
    %70 = vperm.xlu0 %69, %v66
    %v71 = vpop.permute.xlu0 %70
    %vm72 = vcmp.eq.s32.totalorder %v68, %v71
    %v73 = vsel %vm72, 1, 0
    %v74 = vcvt.s32.f32 %v73
    %v75 = vld [vmem:[%s3] sm:$0xff]
    %v76 = vld [vmem:[%s3 + $0x8] sm:$0xff]
    %v77 = vld [vmem:[%s3 + $0x10] sm:$0xff]
    %v78 = vld [vmem:[%s3 + $0x18] sm:$0xff]
    %v79 = vld [vmem:[%s3 + $0x20] sm:$0xff]
    %v80 = vld [vmem:[%s3 + $0x28] sm:$0xff]
    %v81 = vld [vmem:[%s3 + $0x30] sm:$0xff]
    %v82 = vld [vmem:[%s3 + $0x38] sm:$0xff]
    %v83 = vld [vmem:[%s3 + $0x40] sm:$0xff]
    %v84 = vld [vmem:[%s3 + $0x48] sm:$0xff]
    %v85 = vld [vmem:[%s3 + $0x50] sm:$0xff]
    %v86 = vld [vmem:[%s3 + $0x58] sm:$0xff]
    %v87 = vld [vmem:[%s3 + $0x60] sm:$0xff]
    %v88 = vld [vmem:[%s3 + $0x68] sm:$0xff]
    %v89 = vld [vmem:[%s3 + $0x70] sm:$0xff]
    %v90 = vld [vmem:[%s3 + $0x78] sm:$0xff]
    %91 = vmatprep.subr.mxu0 0.0
    %92 = vmatpush1.msra.mxu0 %v75
    %93 = vmatprep.subr.mxu0 0.0
    %94 = vmatpush1.msra.mxu0 %v76
    %95 = vmatprep.subr.mxu0 0.0
    %96 = vmatpush1.msra.mxu0 %v77
    %97 = vmatprep.subr.mxu0 0.0
    %98 = vmatpush1.msra.mxu0 %v78
    %99 = vmatprep.subr.mxu0 0.0
    %100 = vmatpush1.msra.mxu0 %v79
    %101 = vmatprep.subr.mxu0 0.0
    %102 = vmatpush1.msra.mxu0 %v80
    %103 = vmatprep.subr.mxu0 0.0
    %104 = vmatpush1.msra.mxu0 %v81
    %105 = vmatprep.subr.mxu0 0.0
    %106 = vmatpush1.msra.mxu0 %v82
    %107 = vmatprep.subr.mxu0 0.0
    %108 = vmatpush1.msra.mxu0 %v83
    %109 = vmatprep.subr.mxu0 0.0
    %110 = vmatpush1.msra.mxu0 %v84
    %111 = vmatprep.subr.mxu0 0.0
    %112 = vmatpush1.msra.mxu0 %v85
    %113 = vmatprep.subr.mxu0 0.0
    %114 = vmatpush1.msra.mxu0 %v86
    %115 = vmatprep.subr.mxu0 0.0
    %116 = vmatpush1.msra.mxu0 %v87
    %117 = vmatprep.subr.mxu0 0.0
    %118 = vmatpush1.msra.mxu0 %v88
    %119 = vmatprep.subr.mxu0 0.0
    %120 = vmatpush1.msra.mxu0 %v89
    %121 = vmatprep.subr.mxu0 0.0
    %122 = vmatpush1.msra.mxu0 %v90
    %123 = vmatprep.subr.mxu0 0.0
    %124 = vmatpush1.msra.mxu0 0.0
    %125 = vmatprep.subr.mxu0 0.0
    %126 = vmatpush1.msra.mxu0 0.0
    %127 = vmatprep.subr.mxu0 0.0
    %128 = vmatpush1.msra.mxu0 0.0
    %129 = vmatprep.subr.mxu0 0.0
    %130 = vmatpush1.msra.mxu0 0.0
    %131 = vmatprep.subr.mxu0 0.0
    %132 = vmatpush1.msra.mxu0 0.0
    %133 = vmatprep.subr.mxu0 0.0
    %134 = vmatpush1.msra.mxu0 0.0
    %135 = vmatprep.subr.mxu0 0.0
    %136 = vmatpush1.msra.mxu0 0.0
    %137 = vmatprep.subr.mxu0 0.0
    %138 = vmatpush1.msra.mxu0 0.0
    %139 = vmatprep.subr.mxu0 0.0
    %140 = vmatpush1.msra.mxu0 0.0
    %141 = vmatprep.subr.mxu0 0.0
    %142 = vmatpush1.msra.mxu0 0.0
    %143 = vmatprep.subr.mxu0 0.0
    %144 = vmatpush1.msra.mxu0 0.0
    %145 = vmatprep.subr.mxu0 0.0
    %146 = vmatpush1.msra.mxu0 0.0
    %147 = vmatprep.subr.mxu0 0.0
    %148 = vmatpush1.msra.mxu0 0.0
    %149 = vmatprep.subr.mxu0 0.0
    %150 = vmatpush1.msra.mxu0 0.0
    %151 = vmatprep.subr.mxu0 0.0
    %152 = vmatpush1.msra.mxu0 0.0
    %153 = vmatprep.subr.mxu0 0.0
    %154 = vmatpush1.msra.mxu0 0.0
    %155 = vmatprep.mubr.f32.mxu0 0.0
    %156 = vmatmul.mubr.f32.gmra.mrb[0].mxu0 %v74
    %v157 = vpop.f32.mrb[0].mxu0
    %v158 = vadd.f32 0.0, %v157
    %v159 = vpop.f32.mrb[0].mxu0
    %160 = vdwg.mxu0
    %v161 = vld [vmem:[%s4] sm:$0xff]
    %v162 = vld [vmem:[%s4 + $0x8] sm:$0xff]
    %v163 = vld [vmem:[%s4 + $0x10] sm:$0xff]
    %v164 = vld [vmem:[%s4 + $0x18] sm:$0xff]
    %v165 = vld [vmem:[%s4 + $0x20] sm:$0xff]
    %v166 = vld [vmem:[%s4 + $0x28] sm:$0xff]
    %v167 = vld [vmem:[%s4 + $0x30] sm:$0xff]
    %v168 = vld [vmem:[%s4 + $0x38] sm:$0xff]
    %vm169 = vcmask 523264
    %v171 = vsel %vm169, %v49, 0
    %173 = vmatprep.subr.mxu0 0.0
    %174 = vmatpush1.msra.mxu0 %v161
    %175 = vmatprep.subr.mxu0 0.0
    %176 = vmatpush1.msra.mxu0 %v162
    %177 = vmatprep.subr.mxu0 0.0
    %178 = vmatpush1.msra.mxu0 %v163
    %179 = vmatprep.subr.mxu0 0.0
    %180 = vmatpush1.msra.mxu0 %v164
    %181 = vmatprep.subr.mxu0 0.0
    %182 = vmatpush1.msra.mxu0 %v165
    %183 = vmatprep.subr.mxu0 0.0
    %184 = vmatpush1.msra.mxu0 %v166
    %185 = vmatprep.subr.mxu0 0.0
    %186 = vmatpush1.msra.mxu0 %v167
    %187 = vmatprep.subr.mxu0 0.0
    %188 = vmatpush1.msra.mxu0 %v168
    %189 = vmatprep.subr.mxu0 0.0
    %190 = vmatpush1.msra.mxu0 0.0
    %191 = vmatprep.subr.mxu0 0.0
    %192 = vmatpush1.msra.mxu0 0.0
    %193 = vmatprep.subr.mxu0 0.0
    %194 = vmatpush1.msra.mxu0 0.0
    %195 = vmatprep.subr.mxu0 0.0
    %196 = vmatpush1.msra.mxu0 0.0
    %197 = vmatprep.subr.mxu0 0.0
    %198 = vmatpush1.msra.mxu0 0.0
    %199 = vmatprep.subr.mxu0 0.0
    %200 = vmatpush1.msra.mxu0 0.0
    %201 = vmatprep.subr.mxu0 0.0
    %202 = vmatpush1.msra.mxu0 0.0
    %203 = vmatprep.subr.mxu0 0.0
    %204 = vmatpush1.msra.mxu0 0.0
    %205 = vmatprep.subr.mxu0 0.0
    %206 = vmatpush1.msra.mxu0 0.0
    %207 = vmatprep.subr.mxu0 0.0
    %208 = vmatpush1.msra.mxu0 0.0
    %209 = vmatprep.subr.mxu0 0.0
    %210 = vmatpush1.msra.mxu0 0.0
    %211 = vmatprep.subr.mxu0 0.0
    %212 = vmatpush1.msra.mxu0 0.0
    %213 = vmatprep.subr.mxu0 0.0
    %214 = vmatpush1.msra.mxu0 0.0
    %215 = vmatprep.subr.mxu0 0.0
    %216 = vmatpush1.msra.mxu0 0.0
    %217 = vmatprep.subr.mxu0 0.0
    %218 = vmatpush1.msra.mxu0 0.0
    %219 = vmatprep.subr.mxu0 0.0
    %220 = vmatpush1.msra.mxu0 0.0
    %221 = vmatprep.subr.mxu0 0.0
    %222 = vmatpush1.msra.mxu0 0.0
    %223 = vmatprep.subr.mxu0 0.0
    %224 = vmatpush1.msra.mxu0 0.0
    %225 = vmatprep.subr.mxu0 0.0
    %226 = vmatpush1.msra.mxu0 0.0
    %227 = vmatprep.subr.mxu0 0.0
    %228 = vmatpush1.msra.mxu0 0.0
    %229 = vmatprep.subr.mxu0 0.0
    %230 = vmatpush1.msra.mxu0 0.0
    %231 = vmatprep.subr.mxu0 0.0
    %232 = vmatpush1.msra.mxu0 0.0
    %233 = vmatprep.subr.mxu0 0.0
    %234 = vmatpush1.msra.mxu0 0.0
    %235 = vmatprep.subr.mxu0 0.0
    %236 = vmatpush1.msra.mxu0 0.0
    %237 = vmatprep.mubr.f32.mxu0 0.0
    %238 = vmatmul.mubr.f32.gmra.mrb[0].mxu0 %v171
    %v239 = vpop.f32.mrb[0].mxu0
    %v240 = vadd.f32 0.0, %v239
    %v241 = vpop.f32.mrb[0].mxu0
    %242 = vdwg.mxu0
    %v243 = vld [vmem:[%s5] sm:$0xff]
    %v244 = vld [vmem:[%s5 + $0x8] sm:$0xff]
    %v245 = vld [vmem:[%s5 + $0x10] sm:$0xff]
    %v246 = vld [vmem:[%s5 + $0x18] sm:$0xff]
    %v247 = vld [vmem:[%s5 + $0x20] sm:$0xff]
    %v248 = vld [vmem:[%s5 + $0x28] sm:$0xff]
    %v249 = vld [vmem:[%s5 + $0x30] sm:$0xff]
    %v250 = vld [vmem:[%s5 + $0x38] sm:$0xff]
    %v252 = vsel %vm169, %v50, 0
    %v255 = vsel %vm169, %v51, 0
    %v258 = vsel %vm169, %v52, 0
    %v261 = vsel %vm169, %v53, 0
    %v264 = vsel %vm169, %v54, 0
    %v267 = vsel %vm169, %v55, 0
    %v270 = vsel %vm169, %v56, 0
    %v273 = vsel %vm169, %v57, 0
    %v276 = vsel %vm169, %v58, 0
    %v279 = vsel %vm169, %v59, 0
    %v282 = vsel %vm169, %v60, 0
    %v285 = vsel %vm169, %v61, 0
    %v288 = vsel %vm169, %v62, 0
    %v291 = vsel %vm169, %v63, 0
    %v294 = vsel %vm169, %v64, 0
    %v297 = vsel %vm169, %v65, 0
    %299 = vmatprep.subr.mxu0 0.0
    %300 = vmatpush1.msra.mxu0 %v243
    %301 = vmatprep.subr.mxu0 0.0
    %302 = vmatpush1.msra.mxu0 %v244
    %303 = vmatprep.subr.mxu0 0.0
    %304 = vmatpush1.msra.mxu0 %v245
    %305 = vmatprep.subr.mxu0 0.0
    %306 = vmatpush1.msra.mxu0 %v246
    %307 = vmatprep.subr.mxu0 0.0
    %308 = vmatpush1.msra.mxu0 %v247
    %309 = vmatprep.subr.mxu0 0.0
    %310 = vmatpush1.msra.mxu0 %v248
    %311 = vmatprep.subr.mxu0 0.0
    %312 = vmatpush1.msra.mxu0 %v249
    %313 = vmatprep.subr.mxu0 0.0
    %314 = vmatpush1.msra.mxu0 %v250
    %315 = vmatprep.subr.mxu0 0.0
    %316 = vmatpush1.msra.mxu0 0.0
    %317 = vmatprep.subr.mxu0 0.0
    %318 = vmatpush1.msra.mxu0 0.0
    %319 = vmatprep.subr.mxu0 0.0
    %320 = vmatpush1.msra.mxu0 0.0
    %321 = vmatprep.subr.mxu0 0.0
    %322 = vmatpush1.msra.mxu0 0.0
    %323 = vmatprep.subr.mxu0 0.0
    %324 = vmatpush1.msra.mxu0 0.0
    %325 = vmatprep.subr.mxu0 0.0
    %326 = vmatpush1.msra.mxu0 0.0
    %327 = vmatprep.subr.mxu0 0.0
    %328 = vmatpush1.msra.mxu0 0.0
    %329 = vmatprep.subr.mxu0 0.0
    %330 = vmatpush1.msra.mxu0 0.0
    %331 = vmatprep.subr.mxu0 0.0
    %332 = vmatpush1.msra.mxu0 0.0
    %333 = vmatprep.subr.mxu0 0.0
    %334 = vmatpush1.msra.mxu0 0.0
    %335 = vmatprep.subr.mxu0 0.0
    %336 = vmatpush1.msra.mxu0 0.0
    %337 = vmatprep.subr.mxu0 0.0
    %338 = vmatpush1.msra.mxu0 0.0
    %339 = vmatprep.subr.mxu0 0.0
    %340 = vmatpush1.msra.mxu0 0.0
    %341 = vmatprep.subr.mxu0 0.0
    %342 = vmatpush1.msra.mxu0 0.0
    %343 = vmatprep.subr.mxu0 0.0
    %344 = vmatpush1.msra.mxu0 0.0
    %345 = vmatprep.subr.mxu0 0.0
    %346 = vmatpush1.msra.mxu0 0.0
    %347 = vmatprep.subr.mxu0 0.0
    %348 = vmatpush1.msra.mxu0 0.0
    %349 = vmatprep.subr.mxu0 0.0
    %350 = vmatpush1.msra.mxu0 0.0
    %351 = vmatprep.subr.mxu0 0.0
    %352 = vmatpush1.msra.mxu0 0.0
    %353 = vmatprep.subr.mxu0 0.0
    %354 = vmatpush1.msra.mxu0 0.0
    %355 = vmatprep.subr.mxu0 0.0
    %356 = vmatpush1.msra.mxu0 0.0
    %357 = vmatprep.subr.mxu0 0.0
    %358 = vmatpush1.msra.mxu0 0.0
    %359 = vmatprep.subr.mxu0 0.0
    %360 = vmatpush1.msra.mxu0 0.0
    %361 = vmatprep.subr.mxu0 0.0
    %362 = vmatpush1.msra.mxu0 0.0
    %363 = vmatprep.mubr.f32.mxu0 0.0
    %364 = vmatmul.mubr.f32.gmra.mrb[0].mxu0 %v252
    %v365 = vpop.f32.mrb[0].mxu0
    %v366 = vadd.f32 0.0, %v365
    %v367 = vpop.f32.mrb[0].mxu0
    %368 = vmatprep.mubr.f32.mxu0 0.0
    %369 = vmatmul.mubr.f32.gmra.mrb[0].mxu0 %v255
    %v370 = vpop.f32.mrb[0].mxu0
    %v371 = vadd.f32 0.0, %v370
    %v372 = vpop.f32.mrb[0].mxu0
    %373 = vmatprep.mubr.f32.mxu0 0.0
    %374 = vmatmul.mubr.f32.gmra.mrb[0].mxu0 %v258
    %v375 = vpop.f32.mrb[0].mxu0
    %v376 = vadd.f32 0.0, %v375
    %v377 = vpop.f32.mrb[0].mxu0
    %378 = vmatprep.mubr.f32.mxu0 0.0
    %379 = vmatmul.mubr.f32.gmra.mrb[0].mxu0 %v261
    %v380 = vpop.f32.mrb[0].mxu0
    %v381 = vadd.f32 0.0, %v380
    %v382 = vpop.f32.mrb[0].mxu0
    %383 = vmatprep.mubr.f32.mxu0 0.0
    %384 = vmatmul.mubr.f32.gmra.mrb[0].mxu0 %v264
    %v385 = vpop.f32.mrb[0].mxu0
    %v386 = vadd.f32 0.0, %v385
    %v387 = vpop.f32.mrb[0].mxu0
    %388 = vmatprep.mubr.f32.mxu0 0.0
    %389 = vmatmul.mubr.f32.gmra.mrb[0].mxu0 %v267
    %v390 = vpop.f32.mrb[0].mxu0
    %v391 = vadd.f32 0.0, %v390
    %v392 = vpop.f32.mrb[0].mxu0
    %393 = vmatprep.mubr.f32.mxu0 0.0
    %394 = vmatmul.mubr.f32.gmra.mrb[0].mxu0 %v270
    %v395 = vpop.f32.mrb[0].mxu0
    %v396 = vadd.f32 0.0, %v395
    %v397 = vpop.f32.mrb[0].mxu0
    %398 = vmatprep.mubr.f32.mxu0 0.0
    %399 = vmatmul.mubr.f32.gmra.mrb[0].mxu0 %v273
    %v400 = vpop.f32.mrb[0].mxu0
    %v401 = vadd.f32 0.0, %v400
    %v402 = vpop.f32.mrb[0].mxu0
    %403 = vmatprep.mubr.f32.mxu0 0.0
    %404 = vmatmul.mubr.f32.gmra.mrb[0].mxu0 %v276
    %v405 = vpop.f32.mrb[0].mxu0
    %v406 = vadd.f32 0.0, %v405
    %v407 = vpop.f32.mrb[0].mxu0
    %408 = vmatprep.mubr.f32.mxu0 0.0
    %409 = vmatmul.mubr.f32.gmra.mrb[0].mxu0 %v279
    %v410 = vpop.f32.mrb[0].mxu0
    %v411 = vadd.f32 0.0, %v410
    %v412 = vpop.f32.mrb[0].mxu0
    %413 = vmatprep.mubr.f32.mxu0 0.0
    %414 = vmatmul.mubr.f32.gmra.mrb[0].mxu0 %v282
    %v415 = vpop.f32.mrb[0].mxu0
    %v416 = vadd.f32 0.0, %v415
    %v417 = vpop.f32.mrb[0].mxu0
    %418 = vmatprep.mubr.f32.mxu0 0.0
    %419 = vmatmul.mubr.f32.gmra.mrb[0].mxu0 %v285
    %v420 = vpop.f32.mrb[0].mxu0
    %v421 = vadd.f32 0.0, %v420
    %v422 = vpop.f32.mrb[0].mxu0
    %423 = vmatprep.mubr.f32.mxu0 0.0
    %424 = vmatmul.mubr.f32.gmra.mrb[0].mxu0 %v288
    %v425 = vpop.f32.mrb[0].mxu0
    %v426 = vadd.f32 0.0, %v425
    %v427 = vpop.f32.mrb[0].mxu0
    %428 = vmatprep.mubr.f32.mxu0 0.0
    %429 = vmatmul.mubr.f32.gmra.mrb[0].mxu0 %v291
    %v430 = vpop.f32.mrb[0].mxu0
    %v431 = vadd.f32 0.0, %v430
    %v432 = vpop.f32.mrb[0].mxu0
    %433 = vmatprep.mubr.f32.mxu0 0.0
    %434 = vmatmul.mubr.f32.gmra.mrb[0].mxu0 %v294
    %v435 = vpop.f32.mrb[0].mxu0
    %v436 = vadd.f32 0.0, %v435
    %v437 = vpop.f32.mrb[0].mxu0
    %438 = vmatprep.mubr.f32.mxu0 0.0
    %439 = vmatmul.mubr.f32.gmra.mrb[0].mxu0 %v297
    %v440 = vpop.f32.mrb[0].mxu0
    %v441 = vadd.f32 0.0, %v440
    %v442 = vpop.f32.mrb[0].mxu0
    %443 = vdwg.mxu0
    %v445 = vcombine.high %v240, %v240
    %v447 = vunpack.c.l.s4 1966171168
    %v448 = vunpack.c.0.s8 %v447
    %v449 = vlaneseq
    %v450 = vshrl.u32 %v449, 7
    %v451 = vsub.s32 %v448, %v450
    %v452 = vrot.slane %v240, %v451
    %v454 = vunpack.c.l.s4 1966171168
    %v455 = vunpack.c.0.s8 %v454
    %v456 = vlaneseq
    %v457 = vshrl.u32 %v456, 7
    %v458 = vsub.s32 %v455, %v457
    %v459 = vrot.slane %v445, %v458
    %v460 = vcombine.high %v452, %v452
    %v461 = vcombine.high %v459, %v459
    %v463 = vunpack.c.l.s4 1966171168
    %v464 = vunpack.c.0.s8 %v463
    %v465 = vlaneseq
    %v466 = vshrl.u32 %v465, 7
    %v467 = vsub.s32 %v464, %v466
    %v468 = vrot.slane %v452, %v467
    %v470 = vunpack.c.l.s4 1966171168
    %v471 = vunpack.c.0.s8 %v470
    %v472 = vlaneseq
    %v473 = vshrl.u32 %v472, 7
    %v474 = vsub.s32 %v471, %v473
    %v475 = vrot.slane %v459, %v474
    %v477 = vunpack.c.l.s4 1966171168
    %v478 = vunpack.c.0.s8 %v477
    %v479 = vlaneseq
    %v480 = vshrl.u32 %v479, 7
    %v481 = vsub.s32 %v478, %v480
    %v482 = vrot.slane %v460, %v481
    %v484 = vunpack.c.l.s4 1966171168
    %v485 = vunpack.c.0.s8 %v484
    %v486 = vlaneseq
    %v487 = vshrl.u32 %v486, 7
    %v488 = vsub.s32 %v485, %v487
    %v489 = vrot.slane %v461, %v488
    %v490 = vcombine.high %v468, %v468
    %v491 = vcombine.high %v475, %v475
    %v492 = vcombine.high %v482, %v482
    %v493 = vcombine.high %v489, %v489
    %v494 = vlaneseq
    %v495 = vshrl.u32 %v494, 7
    %v496 = vsub.s32 0, %v495
    %v497 = vrot.slane %v468, %v496
    %v498 = vlaneseq
    %v499 = vshrl.u32 %v498, 7
    %v500 = vsub.s32 0, %v499
    %v501 = vrot.slane %v482, %v500
    %v502 = vlaneseq
    %v503 = vshrl.u32 %v502, 7
    %v504 = vsub.s32 0, %v503
    %v505 = vrot.slane %v490, %v504
    %v506 = vlaneseq
    %v507 = vshrl.u32 %v506, 7
    %v508 = vsub.s32 0, %v507
    %v509 = vrot.slane %v492, %v508
    %v510 = vlaneseq
    %v511 = vshrl.u32 %v510, 7
    %v512 = vsub.s32 0, %v511
    %v513 = vrot.slane %v475, %v512
    %v514 = vlaneseq
    %v515 = vshrl.u32 %v514, 7
    %v516 = vsub.s32 0, %v515
    %v517 = vrot.slane %v489, %v516
    %v518 = vlaneseq
    %v519 = vshrl.u32 %v518, 7
    %v520 = vsub.s32 0, %v519
    %v521 = vrot.slane %v491, %v520
    %v522 = vlaneseq
    %v523 = vshrl.u32 %v522, 7
    %v524 = vsub.s32 0, %v523
    %v525 = vrot.slane %v493, %v524
    %v534 = vadd.f32 %v366, %v497
    %v535 = vadd.f32 %v371, %v497
    %v536 = vadd.f32 %v376, %v501
    %v537 = vadd.f32 %v381, %v501
    %v538 = vadd.f32 %v386, %v505
    %v539 = vadd.f32 %v391, %v505
    %v540 = vadd.f32 %v396, %v509
    %v541 = vadd.f32 %v401, %v509
    %v542 = vadd.f32 %v406, %v513
    %v543 = vadd.f32 %v411, %v513
    %v544 = vadd.f32 %v416, %v517
    %v545 = vadd.f32 %v421, %v517
    %v546 = vadd.f32 %v426, %v521
    %v547 = vadd.f32 %v431, %v521
    %v548 = vadd.f32 %v436, %v525
    %v549 = vadd.f32 %v441, %v525
    %v550 = vld [vmem:[%s6] sm:$0x1]
    %v552 = vlaneseq
    %v553 = vshrl.u32 %v552, 7
    %v554 = vsub.s32 0, %v553
    %v555 = vrot.slane %v550, %v554
    %v557 = vadd.f32 %v534, %v555
    %v558 = vadd.f32 %v535, %v555
    %v559 = vadd.f32 %v536, %v555
    %v560 = vadd.f32 %v537, %v555
    %v561 = vadd.f32 %v538, %v555
    %v562 = vadd.f32 %v539, %v555
    %v563 = vadd.f32 %v540, %v555
    %v564 = vadd.f32 %v541, %v555
    %v565 = vadd.f32 %v542, %v555
    %v566 = vadd.f32 %v543, %v555
    %v567 = vadd.f32 %v544, %v555
    %v568 = vadd.f32 %v545, %v555
    %v569 = vadd.f32 %v546, %v555
    %v570 = vadd.f32 %v547, %v555
    %v571 = vadd.f32 %v548, %v555
    %v572 = vadd.f32 %v549, %v555
    %v573 = vmax.f32 %v557, 0.0
    %v574 = vmax.f32 %v558, 0.0
    %v575 = vmax.f32 %v559, 0.0
    %v576 = vmax.f32 %v560, 0.0
    %v577 = vmax.f32 %v561, 0.0
    %v578 = vmax.f32 %v562, 0.0
    %v579 = vmax.f32 %v563, 0.0
    %v580 = vmax.f32 %v564, 0.0
    %v581 = vmax.f32 %v565, 0.0
    %v582 = vmax.f32 %v566, 0.0
    %v583 = vmax.f32 %v567, 0.0
    %v584 = vmax.f32 %v568, 0.0
    %v585 = vmax.f32 %v569, 0.0
    %v586 = vmax.f32 %v570, 0.0
    %v587 = vmax.f32 %v571, 0.0
    %v588 = vmax.f32 %v572, 0.0
    %v589 = vld [vmem:[%s7] sm:$0x1]
    %v591 = vlaneseq
    %v592 = vshrl.u32 %v591, 7
    %v593 = vsub.s32 0, %v592
    %v594 = vrot.slane %v589, %v593
    %v596 = vmul.f32 %v573, %v594
    %v597 = vmul.f32 %v574, %v594
    %v598 = vmul.f32 %v575, %v594
    %v599 = vmul.f32 %v576, %v594
    %v600 = vmul.f32 %v577, %v594
    %v601 = vmul.f32 %v578, %v594
    %v602 = vmul.f32 %v579, %v594
    %v603 = vmul.f32 %v580, %v594
    %v604 = vmul.f32 %v581, %v594
    %v605 = vmul.f32 %v582, %v594
    %v606 = vmul.f32 %v583, %v594
    %v607 = vmul.f32 %v584, %v594
    %v608 = vmul.f32 %v585, %v594
    %v609 = vmul.f32 %v586, %v594
    %v610 = vmul.f32 %v587, %v594
    %v611 = vmul.f32 %v588, %v594
    %v612 = vsel %vm169, %v596, 0.0
    %613 = vadd.xlane.f32.xlu0 %v612
    %v614 = vpop.xlane.xlu0 %613
    %v615 = vsel %vm169, %v597, 0.0
    %616 = vadd.xlane.f32.xlu0 %v615
    %v617 = vpop.xlane.xlu0 %616
    %v618 = vsel %vm169, %v598, 0.0
    %619 = vadd.xlane.f32.xlu0 %v618
    %v620 = vpop.xlane.xlu0 %619
    %v621 = vsel %vm169, %v599, 0.0
    %622 = vadd.xlane.f32.xlu0 %v621
    %v623 = vpop.xlane.xlu0 %622
    %v624 = vsel %vm169, %v600, 0.0
    %625 = vadd.xlane.f32.xlu0 %v624
    %v626 = vpop.xlane.xlu0 %625
    %v627 = vsel %vm169, %v601, 0.0
    %628 = vadd.xlane.f32.xlu0 %v627
    %v629 = vpop.xlane.xlu0 %628
    %v630 = vsel %vm169, %v602, 0.0
    %631 = vadd.xlane.f32.xlu0 %v630
    %v632 = vpop.xlane.xlu0 %631
    %v633 = vsel %vm169, %v603, 0.0
    %634 = vadd.xlane.f32.xlu0 %v633
    %v635 = vpop.xlane.xlu0 %634
    %v636 = vsel %vm169, %v604, 0.0
    %637 = vadd.xlane.f32.xlu0 %v636
    %v638 = vpop.xlane.xlu0 %637
    %v639 = vsel %vm169, %v605, 0.0
    %640 = vadd.xlane.f32.xlu0 %v639
    %v641 = vpop.xlane.xlu0 %640
    %v642 = vsel %vm169, %v606, 0.0
    %643 = vadd.xlane.f32.xlu0 %v642
    %v644 = vpop.xlane.xlu0 %643
    %v645 = vsel %vm169, %v607, 0.0
    %646 = vadd.xlane.f32.xlu0 %v645
    %v647 = vpop.xlane.xlu0 %646
    %v648 = vsel %vm169, %v608, 0.0
    %649 = vadd.xlane.f32.xlu0 %v648
    %v650 = vpop.xlane.xlu0 %649
    %v651 = vsel %vm169, %v609, 0.0
    %652 = vadd.xlane.f32.xlu0 %v651
    %v653 = vpop.xlane.xlu0 %652
    %v654 = vsel %vm169, %v610, 0.0
    %655 = vadd.xlane.f32.xlu0 %v654
    %v656 = vpop.xlane.xlu0 %655
    %v657 = vsel %vm169, %v611, 0.0
    %658 = vadd.xlane.f32.xlu0 %v657
    %v659 = vpop.xlane.xlu0 %658
    %v676 = vlaneseq
    %v677 = vshrl.u32 %v676, 7
    %v678 = vsub.s32 %v68, %v677
    %v679 = vrot.slane %v614, %v678
    %v680 = vadd.s32 %v68, 4294967288
    %v681 = vlaneseq
    %v682 = vshrl.u32 %v681, 7
    %v683 = vsub.s32 %v680, %v682
    %v684 = vrot.slane %v617, %v683
    %vm685 = vcmask 130112
    %v686 = vsel %vm685, %v684, %v679
    %v687 = vlaneseq
    %v688 = vshrl.u32 %v687, 7
    %v689 = vsub.s32 %v68, %v688
    %v690 = vrot.slane %v620, %v689
    %v691 = vlaneseq
    %v692 = vshrl.u32 %v691, 7
    %v693 = vsub.s32 %v680, %v692
    %v694 = vrot.slane %v623, %v693
    %v695 = vsel %vm685, %v694, %v690
    %v696 = vlaneseq
    %v697 = vshrl.u32 %v696, 7
    %v698 = vsub.s32 %v68, %v697
    %v699 = vrot.slane %v626, %v698
    %v700 = vlaneseq
    %v701 = vshrl.u32 %v700, 7
    %v702 = vsub.s32 %v680, %v701
    %v703 = vrot.slane %v629, %v702
    %v704 = vsel %vm685, %v703, %v699
    %v705 = vlaneseq
    %v706 = vshrl.u32 %v705, 7
    %v707 = vsub.s32 %v68, %v706
    %v708 = vrot.slane %v632, %v707
    %v709 = vlaneseq
    %v710 = vshrl.u32 %v709, 7
    %v711 = vsub.s32 %v680, %v710
    %v712 = vrot.slane %v635, %v711
    %v713 = vsel %vm685, %v712, %v708
    %v714 = vlaneseq
    %v715 = vshrl.u32 %v714, 7
    %v716 = vsub.s32 %v68, %v715
    %v717 = vrot.slane %v638, %v716
    %v718 = vlaneseq
    %v719 = vshrl.u32 %v718, 7
    %v720 = vsub.s32 %v680, %v719
    %v721 = vrot.slane %v641, %v720
    %v722 = vsel %vm685, %v721, %v717
    %v723 = vlaneseq
    %v724 = vshrl.u32 %v723, 7
    %v725 = vsub.s32 %v68, %v724
    %v726 = vrot.slane %v644, %v725
    %v727 = vlaneseq
    %v728 = vshrl.u32 %v727, 7
    %v729 = vsub.s32 %v680, %v728
    %v730 = vrot.slane %v647, %v729
    %v731 = vsel %vm685, %v730, %v726
    %v732 = vlaneseq
    %v733 = vshrl.u32 %v732, 7
    %v734 = vsub.s32 %v68, %v733
    %v735 = vrot.slane %v650, %v734
    %v736 = vlaneseq
    %v737 = vshrl.u32 %v736, 7
    %v738 = vsub.s32 %v680, %v737
    %v739 = vrot.slane %v653, %v738
    %v740 = vsel %vm685, %v739, %v735
    %v741 = vlaneseq
    %v742 = vshrl.u32 %v741, 7
    %v743 = vsub.s32 %v68, %v742
    %v744 = vrot.slane %v656, %v743
    %v745 = vlaneseq
    %v746 = vshrl.u32 %v745, 7
    %v747 = vsub.s32 %v680, %v746
    %v748 = vrot.slane %v659, %v747
    %v749 = vsel %vm685, %v748, %v744
    %vm750 = vcmask 1041409
    %v751 = vsel %vm750, %v695, %v686
    %vm752 = vcmask 1042434
    %v753 = vsel %vm752, %v704, %v751
    %vm754 = vcmask 1043459
    %v755 = vsel %vm754, %v713, %v753
    %vm756 = vcmask 1044484
    %v757 = vsel %vm756, %v722, %v755
    %vm758 = vcmask 1045509
    %v759 = vsel %vm758, %v731, %v757
    %vm760 = vcmask 1046534
    %v761 = vsel %vm760, %v740, %v759
    %vm762 = vcmask 1047559
    %v763 = vsel %vm762, %v749, %v761
    %vm765 = vcmask 130048
    %v766 = vsel %vm765, %v763, -inf
    %767 = vmax.xlane.f32.xlu0 %v766
    %v768 = vpop.xlane.xlu0 %767
    %v770 = vlaneseq
    %v771 = vshrl.u32 %v770, 7
    %v772 = vsub.s32 0, %v771
    %v773 = vrot.slane %v768, %v772
    %v774 = vlaneseq
    %v775 = vshrl.u32 %v774, 7
    %v776 = vsub.s32 1, %v775
    %v777 = vrot.slane %v768, %v776
    %v778 = vlaneseq
    %v779 = vshrl.u32 %v778, 7
    %v780 = vsub.s32 2, %v779
    %v781 = vrot.slane %v768, %v780
    %v782 = vlaneseq
    %v783 = vshrl.u32 %v782, 7
    %v784 = vsub.s32 3, %v783
    %v785 = vrot.slane %v768, %v784
    %v786 = vlaneseq
    %v787 = vshrl.u32 %v786, 7
    %v788 = vsub.s32 4, %v787
    %v789 = vrot.slane %v768, %v788
    %v790 = vlaneseq
    %v791 = vshrl.u32 %v790, 7
    %v792 = vsub.s32 5, %v791
    %v793 = vrot.slane %v768, %v792
    %v794 = vlaneseq
    %v795 = vshrl.u32 %v794, 7
    %v796 = vsub.s32 6, %v795
    %v797 = vrot.slane %v768, %v796
    %v798 = vlaneseq
    %v799 = vshrl.u32 %v798, 7
    %v800 = vsub.s32 7, %v799
    %v801 = vrot.slane %v768, %v800
    %v810 = vsub.f32 %v614, %v773
    %v811 = vsub.f32 %v617, %v773
    %v812 = vsub.f32 %v620, %v777
    %v813 = vsub.f32 %v623, %v777
    %v814 = vsub.f32 %v626, %v781
    %v815 = vsub.f32 %v629, %v781
    %v816 = vsub.f32 %v632, %v785
    %v817 = vsub.f32 %v635, %v785
    %v818 = vsub.f32 %v638, %v789
    %v819 = vsub.f32 %v641, %v789
    %v820 = vsub.f32 %v644, %v793
    %v821 = vsub.f32 %v647, %v793
    %v822 = vsub.f32 %v650, %v797
    %v823 = vsub.f32 %v653, %v797
    %v824 = vsub.f32 %v656, %v801
    %v825 = vsub.f32 %v659, %v801
    %v826 = vmul.f32 %v810, 1.442695
    %v827 = vpow.pop %v826
    %v828 = vmul.f32 %v811, 1.442695
    %v829 = vpow.pop %v828
    %v830 = vmul.f32 %v812, 1.442695
    %v831 = vpow.pop %v830
    %v832 = vmul.f32 %v813, 1.442695
    %v833 = vpow.pop %v832
    %v834 = vmul.f32 %v814, 1.442695
    %v835 = vpow.pop %v834
    %v836 = vmul.f32 %v815, 1.442695
    %v837 = vpow.pop %v836
    %v838 = vmul.f32 %v816, 1.442695
    %v839 = vpow.pop %v838
    %v840 = vmul.f32 %v817, 1.442695
    %v841 = vpow.pop %v840
    %v842 = vmul.f32 %v818, 1.442695
    %v843 = vpow.pop %v842
    %v844 = vmul.f32 %v819, 1.442695
    %v845 = vpow.pop %v844
    %v846 = vmul.f32 %v820, 1.442695
    %v847 = vpow.pop %v846
    %v848 = vmul.f32 %v821, 1.442695
    %v849 = vpow.pop %v848
    %v850 = vmul.f32 %v822, 1.442695
    %v851 = vpow.pop %v850
    %v852 = vmul.f32 %v823, 1.442695
    %v853 = vpow.pop %v852
    %v854 = vmul.f32 %v824, 1.442695
    %v855 = vpow.pop %v854
    %v856 = vmul.f32 %v825, 1.442695
    %v857 = vpow.pop %v856
    %874 = vset.pattern.permute.xlu0 0
    %875 = vperm.xlu0 %874, %v827
    %v876 = vpop.permute.xlu0 %875
    %877 = vset.pattern.permute.xlu0 0
    %878 = vperm.xlu0 %877, %v829
    %v879 = vpop.permute.xlu0 %878
    %880 = vset.pattern.permute.xlu0 0
    %881 = vperm.xlu0 %880, %v831
    %v882 = vpop.permute.xlu0 %881
    %883 = vset.pattern.permute.xlu0 0
    %884 = vperm.xlu0 %883, %v833
    %v885 = vpop.permute.xlu0 %884
    %886 = vset.pattern.permute.xlu0 0
    %887 = vperm.xlu0 %886, %v835
    %v888 = vpop.permute.xlu0 %887
    %889 = vset.pattern.permute.xlu0 0
    %890 = vperm.xlu0 %889, %v837
    %v891 = vpop.permute.xlu0 %890
    %892 = vset.pattern.permute.xlu0 0
    %893 = vperm.xlu0 %892, %v839
    %v894 = vpop.permute.xlu0 %893
    %895 = vset.pattern.permute.xlu0 0
    %896 = vperm.xlu0 %895, %v841
    %v897 = vpop.permute.xlu0 %896
    %898 = vset.pattern.permute.xlu0 0
    %899 = vperm.xlu0 %898, %v843
    %v900 = vpop.permute.xlu0 %899
    %901 = vset.pattern.permute.xlu0 0
    %902 = vperm.xlu0 %901, %v845
    %v903 = vpop.permute.xlu0 %902
    %904 = vset.pattern.permute.xlu0 0
    %905 = vperm.xlu0 %904, %v847
    %v906 = vpop.permute.xlu0 %905
    %907 = vset.pattern.permute.xlu0 0
    %908 = vperm.xlu0 %907, %v849
    %v909 = vpop.permute.xlu0 %908
    %910 = vset.pattern.permute.xlu0 0
    %911 = vperm.xlu0 %910, %v851
    %v912 = vpop.permute.xlu0 %911
    %913 = vset.pattern.permute.xlu0 0
    %914 = vperm.xlu0 %913, %v853
    %v915 = vpop.permute.xlu0 %914
    %916 = vset.pattern.permute.xlu0 0
    %917 = vperm.xlu0 %916, %v855
    %v918 = vpop.permute.xlu0 %917
    %919 = vset.pattern.permute.xlu0 0
    %920 = vperm.xlu0 %919, %v857
    %v921 = vpop.permute.xlu0 %920
    %v922 = vlaneseq
    %v923 = vshrl.u32 %v922, 7
    %v924 = vsub.s32 %v68, %v923
    %v925 = vrot.slane %v876, %v924
    %v926 = vlaneseq
    %v927 = vshrl.u32 %v926, 7
    %v928 = vsub.s32 %v680, %v927
    %v929 = vrot.slane %v879, %v928
    %v930 = vsel %vm685, %v929, %v925
    %v931 = vlaneseq
    %v932 = vshrl.u32 %v931, 7
    %v933 = vsub.s32 %v68, %v932
    %v934 = vrot.slane %v882, %v933
    %v935 = vlaneseq
    %v936 = vshrl.u32 %v935, 7
    %v937 = vsub.s32 %v680, %v936
    %v938 = vrot.slane %v885, %v937
    %v939 = vsel %vm685, %v938, %v934
    %v940 = vlaneseq
    %v941 = vshrl.u32 %v940, 7
    %v942 = vsub.s32 %v68, %v941
    %v943 = vrot.slane %v888, %v942
    %v944 = vlaneseq
    %v945 = vshrl.u32 %v944, 7
    %v946 = vsub.s32 %v680, %v945
    %v947 = vrot.slane %v891, %v946
    %v948 = vsel %vm685, %v947, %v943
    %v949 = vlaneseq
    %v950 = vshrl.u32 %v949, 7
    %v951 = vsub.s32 %v68, %v950
    %v952 = vrot.slane %v894, %v951
    %v953 = vlaneseq
    %v954 = vshrl.u32 %v953, 7
    %v955 = vsub.s32 %v680, %v954
    %v956 = vrot.slane %v897, %v955
    %v957 = vsel %vm685, %v956, %v952
    %v958 = vlaneseq
    %v959 = vshrl.u32 %v958, 7
    %v960 = vsub.s32 %v68, %v959
    %v961 = vrot.slane %v900, %v960
    %v962 = vlaneseq
    %v963 = vshrl.u32 %v962, 7
    %v964 = vsub.s32 %v680, %v963
    %v965 = vrot.slane %v903, %v964
    %v966 = vsel %vm685, %v965, %v961
    %v967 = vlaneseq
    %v968 = vshrl.u32 %v967, 7
    %v969 = vsub.s32 %v68, %v968
    %v970 = vrot.slane %v906, %v969
    %v971 = vlaneseq
    %v972 = vshrl.u32 %v971, 7
    %v973 = vsub.s32 %v680, %v972
    %v974 = vrot.slane %v909, %v973
    %v975 = vsel %vm685, %v974, %v970
    %v976 = vlaneseq
    %v977 = vshrl.u32 %v976, 7
    %v978 = vsub.s32 %v68, %v977
    %v979 = vrot.slane %v912, %v978
    %v980 = vlaneseq
    %v981 = vshrl.u32 %v980, 7
    %v982 = vsub.s32 %v680, %v981
    %v983 = vrot.slane %v915, %v982
    %v984 = vsel %vm685, %v983, %v979
    %v985 = vlaneseq
    %v986 = vshrl.u32 %v985, 7
    %v987 = vsub.s32 %v68, %v986
    %v988 = vrot.slane %v918, %v987
    %v989 = vlaneseq
    %v990 = vshrl.u32 %v989, 7
    %v991 = vsub.s32 %v680, %v990
    %v992 = vrot.slane %v921, %v991
    %v993 = vsel %vm685, %v992, %v988
    %v994 = vsel %vm750, %v939, %v930
    %v995 = vsel %vm752, %v948, %v994
    %v996 = vsel %vm754, %v957, %v995
    %v997 = vsel %vm756, %v966, %v996
    %v998 = vsel %vm758, %v975, %v997
    %v999 = vsel %vm760, %v984, %v998
    %v1000 = vsel %vm762, %v993, %v999
    %v1002 = vsel %vm765, %v1000, 0.0
    %1003 = vadd.xlane.f32.xlu0 %v1002
    %v1004 = vpop.xlane.xlu0 %1003
    %v1006 = vlaneseq
    %v1007 = vshrl.u32 %v1006, 7
    %v1008 = vsub.s32 0, %v1007
    %v1009 = vrot.slane %v1004, %v1008
    %v1010 = vlaneseq
    %v1011 = vshrl.u32 %v1010, 7
    %v1012 = vsub.s32 1, %v1011
    %v1013 = vrot.slane %v1004, %v1012
    %v1014 = vlaneseq
    %v1015 = vshrl.u32 %v1014, 7
    %v1016 = vsub.s32 2, %v1015
    %v1017 = vrot.slane %v1004, %v1016
    %v1018 = vlaneseq
    %v1019 = vshrl.u32 %v1018, 7
    %v1020 = vsub.s32 3, %v1019
    %v1021 = vrot.slane %v1004, %v1020
    %v1022 = vlaneseq
    %v1023 = vshrl.u32 %v1022, 7
    %v1024 = vsub.s32 4, %v1023
    %v1025 = vrot.slane %v1004, %v1024
    %v1026 = vlaneseq
    %v1027 = vshrl.u32 %v1026, 7
    %v1028 = vsub.s32 5, %v1027
    %v1029 = vrot.slane %v1004, %v1028
    %v1030 = vlaneseq
    %v1031 = vshrl.u32 %v1030, 7
    %v1032 = vsub.s32 6, %v1031
    %v1033 = vrot.slane %v1004, %v1032
    %v1034 = vlaneseq
    %v1035 = vshrl.u32 %v1034, 7
    %v1036 = vsub.s32 7, %v1035
    %v1037 = vrot.slane %v1004, %v1036
    %v1046 = vrcp.pop %v1009
    %v1047 = vmul.f32 %v827, %v1046
    %v1048 = vmul.f32 %v829, %v1046
    %v1049 = vrcp.pop %v1013
    %v1050 = vmul.f32 %v831, %v1049
    %v1051 = vmul.f32 %v833, %v1049
    %v1052 = vrcp.pop %v1017
    %v1053 = vmul.f32 %v835, %v1052
    %v1054 = vmul.f32 %v837, %v1052
    %v1055 = vrcp.pop %v1021
    %v1056 = vmul.f32 %v839, %v1055
    %v1057 = vmul.f32 %v841, %v1055
    %v1058 = vrcp.pop %v1025
    %v1059 = vmul.f32 %v843, %v1058
    %v1060 = vmul.f32 %v845, %v1058
    %v1061 = vrcp.pop %v1029
    %v1062 = vmul.f32 %v847, %v1061
    %v1063 = vmul.f32 %v849, %v1061
    %v1064 = vrcp.pop %v1033
    %v1065 = vmul.f32 %v851, %v1064
    %v1066 = vmul.f32 %v853, %v1064
    %v1067 = vrcp.pop %v1037
    %v1068 = vmul.f32 %v855, %v1067
    %v1069 = vmul.f32 %v857, %v1067
    %1086 = vset.pattern.permute.xlu0 0
    %1087 = vperm.xlu0 %1086, %v1047
    %v1088 = vpop.permute.xlu0 %1087
    %1089 = vset.pattern.permute.xlu0 0
    %1090 = vperm.xlu0 %1089, %v1048
    %v1091 = vpop.permute.xlu0 %1090
    %1092 = vset.pattern.permute.xlu0 0
    %1093 = vperm.xlu0 %1092, %v1050
    %v1094 = vpop.permute.xlu0 %1093
    %1095 = vset.pattern.permute.xlu0 0
    %1096 = vperm.xlu0 %1095, %v1051
    %v1097 = vpop.permute.xlu0 %1096
    %1098 = vset.pattern.permute.xlu0 0
    %1099 = vperm.xlu0 %1098, %v1053
    %v1100 = vpop.permute.xlu0 %1099
    %1101 = vset.pattern.permute.xlu0 0
    %1102 = vperm.xlu0 %1101, %v1054
    %v1103 = vpop.permute.xlu0 %1102
    %1104 = vset.pattern.permute.xlu0 0
    %1105 = vperm.xlu0 %1104, %v1056
    %v1106 = vpop.permute.xlu0 %1105
    %1107 = vset.pattern.permute.xlu0 0
    %1108 = vperm.xlu0 %1107, %v1057
    %v1109 = vpop.permute.xlu0 %1108
    %1110 = vset.pattern.permute.xlu0 0
    %1111 = vperm.xlu0 %1110, %v1059
    %v1112 = vpop.permute.xlu0 %1111
    %1113 = vset.pattern.permute.xlu0 0
    %1114 = vperm.xlu0 %1113, %v1060
    %v1115 = vpop.permute.xlu0 %1114
    %1116 = vset.pattern.permute.xlu0 0
    %1117 = vperm.xlu0 %1116, %v1062
    %v1118 = vpop.permute.xlu0 %1117
    %1119 = vset.pattern.permute.xlu0 0
    %1120 = vperm.xlu0 %1119, %v1063
    %v1121 = vpop.permute.xlu0 %1120
    %1122 = vset.pattern.permute.xlu0 0
    %1123 = vperm.xlu0 %1122, %v1065
    %v1124 = vpop.permute.xlu0 %1123
    %1125 = vset.pattern.permute.xlu0 0
    %1126 = vperm.xlu0 %1125, %v1066
    %v1127 = vpop.permute.xlu0 %1126
    %1128 = vset.pattern.permute.xlu0 0
    %1129 = vperm.xlu0 %1128, %v1068
    %v1130 = vpop.permute.xlu0 %1129
    %1131 = vset.pattern.permute.xlu0 0
    %1132 = vperm.xlu0 %1131, %v1069
    %v1133 = vpop.permute.xlu0 %1132
    %v1134 = vlaneseq
    %v1135 = vshrl.u32 %v1134, 7
    %v1136 = vsub.s32 %v68, %v1135
    %v1137 = vrot.slane %v1088, %v1136
    %v1138 = vlaneseq
    %v1139 = vshrl.u32 %v1138, 7
    %v1140 = vsub.s32 %v680, %v1139
    %v1141 = vrot.slane %v1091, %v1140
    %v1142 = vsel %vm685, %v1141, %v1137
    %v1143 = vlaneseq
    %v1144 = vshrl.u32 %v1143, 7
    %v1145 = vsub.s32 %v68, %v1144
    %v1146 = vrot.slane %v1094, %v1145
    %v1147 = vlaneseq
    %v1148 = vshrl.u32 %v1147, 7
    %v1149 = vsub.s32 %v680, %v1148
    %v1150 = vrot.slane %v1097, %v1149
    %v1151 = vsel %vm685, %v1150, %v1146
    %v1152 = vlaneseq
    %v1153 = vshrl.u32 %v1152, 7
    %v1154 = vsub.s32 %v68, %v1153
    %v1155 = vrot.slane %v1100, %v1154
    %v1156 = vlaneseq
    %v1157 = vshrl.u32 %v1156, 7
    %v1158 = vsub.s32 %v680, %v1157
    %v1159 = vrot.slane %v1103, %v1158
    %v1160 = vsel %vm685, %v1159, %v1155
    %v1161 = vlaneseq
    %v1162 = vshrl.u32 %v1161, 7
    %v1163 = vsub.s32 %v68, %v1162
    %v1164 = vrot.slane %v1106, %v1163
    %v1165 = vlaneseq
    %v1166 = vshrl.u32 %v1165, 7
    %v1167 = vsub.s32 %v680, %v1166
    %v1168 = vrot.slane %v1109, %v1167
    %v1169 = vsel %vm685, %v1168, %v1164
    %v1170 = vlaneseq
    %v1171 = vshrl.u32 %v1170, 7
    %v1172 = vsub.s32 %v68, %v1171
    %v1173 = vrot.slane %v1112, %v1172
    %v1174 = vlaneseq
    %v1175 = vshrl.u32 %v1174, 7
    %v1176 = vsub.s32 %v680, %v1175
    %v1177 = vrot.slane %v1115, %v1176
    %v1178 = vsel %vm685, %v1177, %v1173
    %v1179 = vlaneseq
    %v1180 = vshrl.u32 %v1179, 7
    %v1181 = vsub.s32 %v68, %v1180
    %v1182 = vrot.slane %v1118, %v1181
    %v1183 = vlaneseq
    %v1184 = vshrl.u32 %v1183, 7
    %v1185 = vsub.s32 %v680, %v1184
    %v1186 = vrot.slane %v1121, %v1185
    %v1187 = vsel %vm685, %v1186, %v1182
    %v1188 = vlaneseq
    %v1189 = vshrl.u32 %v1188, 7
    %v1190 = vsub.s32 %v68, %v1189
    %v1191 = vrot.slane %v1124, %v1190
    %v1192 = vlaneseq
    %v1193 = vshrl.u32 %v1192, 7
    %v1194 = vsub.s32 %v680, %v1193
    %v1195 = vrot.slane %v1127, %v1194
    %v1196 = vsel %vm685, %v1195, %v1191
    %v1197 = vlaneseq
    %v1198 = vshrl.u32 %v1197, 7
    %v1199 = vsub.s32 %v68, %v1198
    %v1200 = vrot.slane %v1130, %v1199
    %v1201 = vlaneseq
    %v1202 = vshrl.u32 %v1201, 7
    %v1203 = vsub.s32 %v680, %v1202
    %v1204 = vrot.slane %v1133, %v1203
    %v1205 = vsel %vm685, %v1204, %v1200
    %v1206 = vsel %vm750, %v1151, %v1142
    %v1207 = vsel %vm752, %v1160, %v1206
    %v1208 = vsel %vm754, %v1169, %v1207
    %v1209 = vsel %vm756, %v1178, %v1208
    %v1210 = vsel %vm758, %v1187, %v1209
    %v1211 = vsel %vm760, %v1196, %v1210
    %v1212 = vsel %vm762, %v1205, %v1211
    %1214 = vst.msk [vmem:[#allocation4] sm:$0xff] %vm765, %v1212
    %v1215 = vsel %vm765, %v1142, 0
    %1217 = vmatprep.subr.mxu0 0.0
    %1218 = vmatpush1.msra.mxu0 %v50
    %1219 = vmatprep.subr.mxu0 0.0
    %1220 = vmatpush1.msra.mxu0 %v51
    %1221 = vmatprep.subr.mxu0 0.0
    %1222 = vmatpush1.msra.mxu0 0.0
    %1223 = vmatprep.subr.mxu0 0.0
    %1224 = vmatpush1.msra.mxu0 0.0
    %1225 = vmatprep.subr.mxu0 0.0
    %1226 = vmatpush1.msra.mxu0 0.0
    %1227 = vmatprep.subr.mxu0 0.0
    %1228 = vmatpush1.msra.mxu0 0.0
    %1229 = vmatprep.subr.mxu0 0.0
    %1230 = vmatpush1.msra.mxu0 0.0
    %1231 = vmatprep.subr.mxu0 0.0
    %1232 = vmatpush1.msra.mxu0 0.0
    %1233 = vmatprep.subr.mxu0 0.0
    %1234 = vmatpush1.msra.mxu0 0.0
    %1235 = vmatprep.subr.mxu0 0.0
    %1236 = vmatpush1.msra.mxu0 0.0
    %1237 = vmatprep.subr.mxu0 0.0
    %1238 = vmatpush1.msra.mxu0 0.0
    %1239 = vmatprep.subr.mxu0 0.0
    %1240 = vmatpush1.msra.mxu0 0.0
    %1241 = vmatprep.subr.mxu0 0.0
    %1242 = vmatpush1.msra.mxu0 0.0
    %1243 = vmatprep.subr.mxu0 0.0
    %1244 = vmatpush1.msra.mxu0 0.0
    %1245 = vmatprep.subr.mxu0 0.0
    %1246 = vmatpush1.msra.mxu0 0.0
    %1247 = vmatprep.subr.mxu0 0.0
    %1248 = vmatpush1.msra.mxu0 0.0
    %1249 = vmatprep.subr.mxu0 0.0
    %1250 = vmatpush1.msra.mxu0 0.0
    %1251 = vmatprep.subr.mxu0 0.0
    %1252 = vmatpush1.msra.mxu0 0.0
    %1253 = vmatprep.subr.mxu0 0.0
    %1254 = vmatpush1.msra.mxu0 0.0
    %1255 = vmatprep.subr.mxu0 0.0
    %1256 = vmatpush1.msra.mxu0 0.0
    %1257 = vmatprep.subr.mxu0 0.0
    %1258 = vmatpush1.msra.mxu0 0.0
    %1259 = vmatprep.subr.mxu0 0.0
    %1260 = vmatpush1.msra.mxu0 0.0
    %1261 = vmatprep.subr.mxu0 0.0
    %1262 = vmatpush1.msra.mxu0 0.0
    %1263 = vmatprep.subr.mxu0 0.0
    %1264 = vmatpush1.msra.mxu0 0.0
    %1265 = vmatprep.subr.mxu0 0.0
    %1266 = vmatpush1.msra.mxu0 0.0
    %1267 = vmatprep.subr.mxu0 0.0
    %1268 = vmatpush1.msra.mxu0 0.0
    %1269 = vmatprep.subr.mxu0 0.0
    %1270 = vmatpush1.msra.mxu0 0.0
    %1271 = vmatprep.subr.mxu0 0.0
    %1272 = vmatpush1.msra.mxu0 0.0
    %1273 = vmatprep.subr.mxu0 0.0
    %1274 = vmatpush1.msra.mxu0 0.0
    %1275 = vmatprep.subr.mxu0 0.0
    %1276 = vmatpush1.msra.mxu0 0.0
    %1277 = vmatprep.subr.mxu0 0.0
    %1278 = vmatpush1.msra.mxu0 0.0
    %1279 = vmatprep.subr.mxu0 0.0
    %1280 = vmatpush1.msra.mxu0 0.0
    %1281 = vmatprep.mubr.f32.mxu0 0.0
    %1282 = vmatmul.mubr.f32.gmra.mrb[0].mxu0 %v1215
    %v1283 = vpop.f32.mrb[0].mxu0
    %v1284 = vadd.f32 0.0, %v1283
    %v1285 = vpop.f32.mrb[0].mxu0
    %1286 = vdwg.mxu0
    %v1287 = vsel %vm765, %v1151, 0
    %1289 = vmatprep.subr.mxu0 0.0
    %1290 = vmatpush1.msra.mxu0 %v52
    %1291 = vmatprep.subr.mxu0 0.0
    %1292 = vmatpush1.msra.mxu0 %v53
    %1293 = vmatprep.subr.mxu0 0.0
    %1294 = vmatpush1.msra.mxu0 0.0
    %1295 = vmatprep.subr.mxu0 0.0
    %1296 = vmatpush1.msra.mxu0 0.0
    %1297 = vmatprep.subr.mxu0 0.0
    %1298 = vmatpush1.msra.mxu0 0.0
    %1299 = vmatprep.subr.mxu0 0.0
    %1300 = vmatpush1.msra.mxu0 0.0
    %1301 = vmatprep.subr.mxu0 0.0
    %1302 = vmatpush1.msra.mxu0 0.0
    %1303 = vmatprep.subr.mxu0 0.0
    %1304 = vmatpush1.msra.mxu0 0.0
    %1305 = vmatprep.subr.mxu0 0.0
    %1306 = vmatpush1.msra.mxu0 0.0
    %1307 = vmatprep.subr.mxu0 0.0
    %1308 = vmatpush1.msra.mxu0 0.0
    %1309 = vmatprep.subr.mxu0 0.0
    %1310 = vmatpush1.msra.mxu0 0.0
    %1311 = vmatprep.subr.mxu0 0.0
    %1312 = vmatpush1.msra.mxu0 0.0
    %1313 = vmatprep.subr.mxu0 0.0
    %1314 = vmatpush1.msra.mxu0 0.0
    %1315 = vmatprep.subr.mxu0 0.0
    %1316 = vmatpush1.msra.mxu0 0.0
    %1317 = vmatprep.subr.mxu0 0.0
    %1318 = vmatpush1.msra.mxu0 0.0
    %1319 = vmatprep.subr.mxu0 0.0
    %1320 = vmatpush1.msra.mxu0 0.0
    %1321 = vmatprep.subr.mxu0 0.0
    %1322 = vmatpush1.msra.mxu0 0.0
    %1323 = vmatprep.subr.mxu0 0.0
    %1324 = vmatpush1.msra.mxu0 0.0
    %1325 = vmatprep.subr.mxu0 0.0
    %1326 = vmatpush1.msra.mxu0 0.0
    %1327 = vmatprep.subr.mxu0 0.0
    %1328 = vmatpush1.msra.mxu0 0.0
    %1329 = vmatprep.subr.mxu0 0.0
    %1330 = vmatpush1.msra.mxu0 0.0
    %1331 = vmatprep.subr.mxu0 0.0
    %1332 = vmatpush1.msra.mxu0 0.0
    %1333 = vmatprep.subr.mxu0 0.0
    %1334 = vmatpush1.msra.mxu0 0.0
    %1335 = vmatprep.subr.mxu0 0.0
    %1336 = vmatpush1.msra.mxu0 0.0
    %1337 = vmatprep.subr.mxu0 0.0
    %1338 = vmatpush1.msra.mxu0 0.0
    %1339 = vmatprep.subr.mxu0 0.0
    %1340 = vmatpush1.msra.mxu0 0.0
    %1341 = vmatprep.subr.mxu0 0.0
    %1342 = vmatpush1.msra.mxu0 0.0
    %1343 = vmatprep.subr.mxu0 0.0
    %1344 = vmatpush1.msra.mxu0 0.0
    %1345 = vmatprep.subr.mxu0 0.0
    %1346 = vmatpush1.msra.mxu0 0.0
    %1347 = vmatprep.subr.mxu0 0.0
    %1348 = vmatpush1.msra.mxu0 0.0
    %1349 = vmatprep.subr.mxu0 0.0
    %1350 = vmatpush1.msra.mxu0 0.0
    %1351 = vmatprep.subr.mxu0 0.0
    %1352 = vmatpush1.msra.mxu0 0.0
    %1353 = vmatprep.mubr.f32.mxu0 0.0
    %1354 = vmatmul.mubr.f32.gmra.mrb[0].mxu0 %v1287
    %v1355 = vpop.f32.mrb[0].mxu0
    %v1356 = vadd.f32 0.0, %v1355
    %v1357 = vpop.f32.mrb[0].mxu0
    %1358 = vdwg.mxu0
    %v1359 = vsel %vm765, %v1160, 0
    %1361 = vmatprep.subr.mxu0 0.0
    %1362 = vmatpush1.msra.mxu0 %v54
    %1363 = vmatprep.subr.mxu0 0.0
    %1364 = vmatpush1.msra.mxu0 %v55
    %1365 = vmatprep.subr.mxu0 0.0
    %1366 = vmatpush1.msra.mxu0 0.0
    %1367 = vmatprep.subr.mxu0 0.0
    %1368 = vmatpush1.msra.mxu0 0.0
    %1369 = vmatprep.subr.mxu0 0.0
    %1370 = vmatpush1.msra.mxu0 0.0
    %1371 = vmatprep.subr.mxu0 0.0
    %1372 = vmatpush1.msra.mxu0 0.0
    %1373 = vmatprep.subr.mxu0 0.0
    %1374 = vmatpush1.msra.mxu0 0.0
    %1375 = vmatprep.subr.mxu0 0.0
    %1376 = vmatpush1.msra.mxu0 0.0
    %1377 = vmatprep.subr.mxu0 0.0
    %1378 = vmatpush1.msra.mxu0 0.0
    %1379 = vmatprep.subr.mxu0 0.0
    %1380 = vmatpush1.msra.mxu0 0.0
    %1381 = vmatprep.subr.mxu0 0.0
    %1382 = vmatpush1.msra.mxu0 0.0
    %1383 = vmatprep.subr.mxu0 0.0
    %1384 = vmatpush1.msra.mxu0 0.0
    %1385 = vmatprep.subr.mxu0 0.0
    %1386 = vmatpush1.msra.mxu0 0.0
    %1387 = vmatprep.subr.mxu0 0.0
    %1388 = vmatpush1.msra.mxu0 0.0
    %1389 = vmatprep.subr.mxu0 0.0
    %1390 = vmatpush1.msra.mxu0 0.0
    %1391 = vmatprep.subr.mxu0 0.0
    %1392 = vmatpush1.msra.mxu0 0.0
    %1393 = vmatprep.subr.mxu0 0.0
    %1394 = vmatpush1.msra.mxu0 0.0
    %1395 = vmatprep.subr.mxu0 0.0
    %1396 = vmatpush1.msra.mxu0 0.0
    %1397 = vmatprep.subr.mxu0 0.0
    %1398 = vmatpush1.msra.mxu0 0.0
    %1399 = vmatprep.subr.mxu0 0.0
    %1400 = vmatpush1.msra.mxu0 0.0
    %1401 = vmatprep.subr.mxu0 0.0
    %1402 = vmatpush1.msra.mxu0 0.0
    %1403 = vmatprep.subr.mxu0 0.0
    %1404 = vmatpush1.msra.mxu0 0.0
    %1405 = vmatprep.subr.mxu0 0.0
    %1406 = vmatpush1.msra.mxu0 0.0
    %1407 = vmatprep.subr.mxu0 0.0
    %1408 = vmatpush1.msra.mxu0 0.0
    %1409 = vmatprep.subr.mxu0 0.0
    %1410 = vmatpush1.msra.mxu0 0.0
    %1411 = vmatprep.subr.mxu0 0.0
    %1412 = vmatpush1.msra.mxu0 0.0
    %1413 = vmatprep.subr.mxu0 0.0
    %1414 = vmatpush1.msra.mxu0 0.0
    %1415 = vmatprep.subr.mxu0 0.0
    %1416 = vmatpush1.msra.mxu0 0.0
    %1417 = vmatprep.subr.mxu0 0.0
    %1418 = vmatpush1.msra.mxu0 0.0
    %1419 = vmatprep.subr.mxu0 0.0
    %1420 = vmatpush1.msra.mxu0 0.0
    %1421 = vmatprep.subr.mxu0 0.0
    %1422 = vmatpush1.msra.mxu0 0.0
    %1423 = vmatprep.subr.mxu0 0.0
    %1424 = vmatpush1.msra.mxu0 0.0
    %1425 = vmatprep.mubr.f32.mxu0 0.0
    %1426 = vmatmul.mubr.f32.gmra.mrb[0].mxu0 %v1359
    %v1427 = vpop.f32.mrb[0].mxu0
    %v1428 = vadd.f32 0.0, %v1427
    %v1429 = vpop.f32.mrb[0].mxu0
    %1430 = vdwg.mxu0
    %v1431 = vsel %vm765, %v1169, 0
    %1433 = vmatprep.subr.mxu0 0.0
    %1434 = vmatpush1.msra.mxu0 %v56
    %1435 = vmatprep.subr.mxu0 0.0
    %1436 = vmatpush1.msra.mxu0 %v57
    %1437 = vmatprep.subr.mxu0 0.0
    %1438 = vmatpush1.msra.mxu0 0.0
    %1439 = vmatprep.subr.mxu0 0.0
    %1440 = vmatpush1.msra.mxu0 0.0
    %1441 = vmatprep.subr.mxu0 0.0
    %1442 = vmatpush1.msra.mxu0 0.0
    %1443 = vmatprep.subr.mxu0 0.0
    %1444 = vmatpush1.msra.mxu0 0.0
    %1445 = vmatprep.subr.mxu0 0.0
    %1446 = vmatpush1.msra.mxu0 0.0
    %1447 = vmatprep.subr.mxu0 0.0
    %1448 = vmatpush1.msra.mxu0 0.0
    %1449 = vmatprep.subr.mxu0 0.0
    %1450 = vmatpush1.msra.mxu0 0.0
    %1451 = vmatprep.subr.mxu0 0.0
    %1452 = vmatpush1.msra.mxu0 0.0
    %1453 = vmatprep.subr.mxu0 0.0
    %1454 = vmatpush1.msra.mxu0 0.0
    %1455 = vmatprep.subr.mxu0 0.0
    %1456 = vmatpush1.msra.mxu0 0.0
    %1457 = vmatprep.subr.mxu0 0.0
    %1458 = vmatpush1.msra.mxu0 0.0
    %1459 = vmatprep.subr.mxu0 0.0
    %1460 = vmatpush1.msra.mxu0 0.0
    %1461 = vmatprep.subr.mxu0 0.0
    %1462 = vmatpush1.msra.mxu0 0.0
    %1463 = vmatprep.subr.mxu0 0.0
    %1464 = vmatpush1.msra.mxu0 0.0
    %1465 = vmatprep.subr.mxu0 0.0
    %1466 = vmatpush1.msra.mxu0 0.0
    %1467 = vmatprep.subr.mxu0 0.0
    %1468 = vmatpush1.msra.mxu0 0.0
    %1469 = vmatprep.subr.mxu0 0.0
    %1470 = vmatpush1.msra.mxu0 0.0
    %1471 = vmatprep.subr.mxu0 0.0
    %1472 = vmatpush1.msra.mxu0 0.0
    %1473 = vmatprep.subr.mxu0 0.0
    %1474 = vmatpush1.msra.mxu0 0.0
    %1475 = vmatprep.subr.mxu0 0.0
    %1476 = vmatpush1.msra.mxu0 0.0
    %1477 = vmatprep.subr.mxu0 0.0
    %1478 = vmatpush1.msra.mxu0 0.0
    %1479 = vmatprep.subr.mxu0 0.0
    %1480 = vmatpush1.msra.mxu0 0.0
    %1481 = vmatprep.subr.mxu0 0.0
    %1482 = vmatpush1.msra.mxu0 0.0
    %1483 = vmatprep.subr.mxu0 0.0
    %1484 = vmatpush1.msra.mxu0 0.0
    %1485 = vmatprep.subr.mxu0 0.0
    %1486 = vmatpush1.msra.mxu0 0.0
    %1487 = vmatprep.subr.mxu0 0.0
    %1488 = vmatpush1.msra.mxu0 0.0
    %1489 = vmatprep.subr.mxu0 0.0
    %1490 = vmatpush1.msra.mxu0 0.0
    %1491 = vmatprep.subr.mxu0 0.0
    %1492 = vmatpush1.msra.mxu0 0.0
    %1493 = vmatprep.subr.mxu0 0.0
    %1494 = vmatpush1.msra.mxu0 0.0
    %1495 = vmatprep.subr.mxu0 0.0
    %1496 = vmatpush1.msra.mxu0 0.0
    %1497 = vmatprep.mubr.f32.mxu0 0.0
    %1498 = vmatmul.mubr.f32.gmra.mrb[0].mxu0 %v1431
    %v1499 = vpop.f32.mrb[0].mxu0
    %v1500 = vadd.f32 0.0, %v1499
    %v1501 = vpop.f32.mrb[0].mxu0
    %1502 = vdwg.mxu0
    %v1503 = vsel %vm765, %v1178, 0
    %1505 = vmatprep.subr.mxu0 0.0
    %1506 = vmatpush1.msra.mxu0 %v58
    %1507 = vmatprep.subr.mxu0 0.0
    %1508 = vmatpush1.msra.mxu0 %v59
    %1509 = vmatprep.subr.mxu0 0.0
    %1510 = vmatpush1.msra.mxu0 0.0
    %1511 = vmatprep.subr.mxu0 0.0
    %1512 = vmatpush1.msra.mxu0 0.0
    %1513 = vmatprep.subr.mxu0 0.0
    %1514 = vmatpush1.msra.mxu0 0.0
    %1515 = vmatprep.subr.mxu0 0.0
    %1516 = vmatpush1.msra.mxu0 0.0
    %1517 = vmatprep.subr.mxu0 0.0
    %1518 = vmatpush1.msra.mxu0 0.0
    %1519 = vmatprep.subr.mxu0 0.0
    %1520 = vmatpush1.msra.mxu0 0.0
    %1521 = vmatprep.subr.mxu0 0.0
    %1522 = vmatpush1.msra.mxu0 0.0
    %1523 = vmatprep.subr.mxu0 0.0
    %1524 = vmatpush1.msra.mxu0 0.0
    %1525 = vmatprep.subr.mxu0 0.0
    %1526 = vmatpush1.msra.mxu0 0.0
    %1527 = vmatprep.subr.mxu0 0.0
    %1528 = vmatpush1.msra.mxu0 0.0
    %1529 = vmatprep.subr.mxu0 0.0
    %1530 = vmatpush1.msra.mxu0 0.0
    %1531 = vmatprep.subr.mxu0 0.0
    %1532 = vmatpush1.msra.mxu0 0.0
    %1533 = vmatprep.subr.mxu0 0.0
    %1534 = vmatpush1.msra.mxu0 0.0
    %1535 = vmatprep.subr.mxu0 0.0
    %1536 = vmatpush1.msra.mxu0 0.0
    %1537 = vmatprep.subr.mxu0 0.0
    %1538 = vmatpush1.msra.mxu0 0.0
    %1539 = vmatprep.subr.mxu0 0.0
    %1540 = vmatpush1.msra.mxu0 0.0
    %1541 = vmatprep.subr.mxu0 0.0
    %1542 = vmatpush1.msra.mxu0 0.0
    %1543 = vmatprep.subr.mxu0 0.0
    %1544 = vmatpush1.msra.mxu0 0.0
    %1545 = vmatprep.subr.mxu0 0.0
    %1546 = vmatpush1.msra.mxu0 0.0
    %1547 = vmatprep.subr.mxu0 0.0
    %1548 = vmatpush1.msra.mxu0 0.0
    %1549 = vmatprep.subr.mxu0 0.0
    %1550 = vmatpush1.msra.mxu0 0.0
    %1551 = vmatprep.subr.mxu0 0.0
    %1552 = vmatpush1.msra.mxu0 0.0
    %1553 = vmatprep.subr.mxu0 0.0
    %1554 = vmatpush1.msra.mxu0 0.0
    %1555 = vmatprep.subr.mxu0 0.0
    %1556 = vmatpush1.msra.mxu0 0.0
    %1557 = vmatprep.subr.mxu0 0.0
    %1558 = vmatpush1.msra.mxu0 0.0
    %1559 = vmatprep.subr.mxu0 0.0
    %1560 = vmatpush1.msra.mxu0 0.0
    %1561 = vmatprep.subr.mxu0 0.0
    %1562 = vmatpush1.msra.mxu0 0.0
    %1563 = vmatprep.subr.mxu0 0.0
    %1564 = vmatpush1.msra.mxu0 0.0
    %1565 = vmatprep.subr.mxu0 0.0
    %1566 = vmatpush1.msra.mxu0 0.0
    %1567 = vmatprep.subr.mxu0 0.0
    %1568 = vmatpush1.msra.mxu0 0.0
    %1569 = vmatprep.mubr.f32.mxu0 0.0
    %1570 = vmatmul.mubr.f32.gmra.mrb[0].mxu0 %v1503
    %v1571 = vpop.f32.mrb[0].mxu0
    %v1572 = vadd.f32 0.0, %v1571
    %v1573 = vpop.f32.mrb[0].mxu0
    %1574 = vdwg.mxu0
    %v1575 = vsel %vm765, %v1187, 0
    %1577 = vmatprep.subr.mxu0 0.0
    %1578 = vmatpush1.msra.mxu0 %v60
    %1579 = vmatprep.subr.mxu0 0.0
    %1580 = vmatpush1.msra.mxu0 %v61
    %1581 = vmatprep.subr.mxu0 0.0
    %1582 = vmatpush1.msra.mxu0 0.0
    %1583 = vmatprep.subr.mxu0 0.0
    %1584 = vmatpush1.msra.mxu0 0.0
    %1585 = vmatprep.subr.mxu0 0.0
    %1586 = vmatpush1.msra.mxu0 0.0
    %1587 = vmatprep.subr.mxu0 0.0
    %1588 = vmatpush1.msra.mxu0 0.0
    %1589 = vmatprep.subr.mxu0 0.0
    %1590 = vmatpush1.msra.mxu0 0.0
    %1591 = vmatprep.subr.mxu0 0.0
    %1592 = vmatpush1.msra.mxu0 0.0
    %1593 = vmatprep.subr.mxu0 0.0
    %1594 = vmatpush1.msra.mxu0 0.0
    %1595 = vmatprep.subr.mxu0 0.0
    %1596 = vmatpush1.msra.mxu0 0.0
    %1597 = vmatprep.subr.mxu0 0.0
    %1598 = vmatpush1.msra.mxu0 0.0
    %1599 = vmatprep.subr.mxu0 0.0
    %1600 = vmatpush1.msra.mxu0 0.0
    %1601 = vmatprep.subr.mxu0 0.0
    %1602 = vmatpush1.msra.mxu0 0.0
    %1603 = vmatprep.subr.mxu0 0.0
    %1604 = vmatpush1.msra.mxu0 0.0
    %1605 = vmatprep.subr.mxu0 0.0
    %1606 = vmatpush1.msra.mxu0 0.0
    %1607 = vmatprep.subr.mxu0 0.0
    %1608 = vmatpush1.msra.mxu0 0.0
    %1609 = vmatprep.subr.mxu0 0.0
    %1610 = vmatpush1.msra.mxu0 0.0
    %1611 = vmatprep.subr.mxu0 0.0
    %1612 = vmatpush1.msra.mxu0 0.0
    %1613 = vmatprep.subr.mxu0 0.0
    %1614 = vmatpush1.msra.mxu0 0.0
    %1615 = vmatprep.subr.mxu0 0.0
    %1616 = vmatpush1.msra.mxu0 0.0
    %1617 = vmatprep.subr.mxu0 0.0
    %1618 = vmatpush1.msra.mxu0 0.0
    %1619 = vmatprep.subr.mxu0 0.0
    %1620 = vmatpush1.msra.mxu0 0.0
    %1621 = vmatprep.subr.mxu0 0.0
    %1622 = vmatpush1.msra.mxu0 0.0
    %1623 = vmatprep.subr.mxu0 0.0
    %1624 = vmatpush1.msra.mxu0 0.0
    %1625 = vmatprep.subr.mxu0 0.0
    %1626 = vmatpush1.msra.mxu0 0.0
    %1627 = vmatprep.subr.mxu0 0.0
    %1628 = vmatpush1.msra.mxu0 0.0
    %1629 = vmatprep.subr.mxu0 0.0
    %1630 = vmatpush1.msra.mxu0 0.0
    %1631 = vmatprep.subr.mxu0 0.0
    %1632 = vmatpush1.msra.mxu0 0.0
    %1633 = vmatprep.subr.mxu0 0.0
    %1634 = vmatpush1.msra.mxu0 0.0
    %1635 = vmatprep.subr.mxu0 0.0
    %1636 = vmatpush1.msra.mxu0 0.0
    %1637 = vmatprep.subr.mxu0 0.0
    %1638 = vmatpush1.msra.mxu0 0.0
    %1639 = vmatprep.subr.mxu0 0.0
    %1640 = vmatpush1.msra.mxu0 0.0
    %1641 = vmatprep.mubr.f32.mxu0 0.0
    %1642 = vmatmul.mubr.f32.gmra.mrb[0].mxu0 %v1575
    %v1643 = vpop.f32.mrb[0].mxu0
    %v1644 = vadd.f32 0.0, %v1643
    %v1645 = vpop.f32.mrb[0].mxu0
    %1646 = vdwg.mxu0
    %v1647 = vsel %vm765, %v1196, 0
    %1649 = vmatprep.subr.mxu0 0.0
    %1650 = vmatpush1.msra.mxu0 %v62
    %1651 = vmatprep.subr.mxu0 0.0
    %1652 = vmatpush1.msra.mxu0 %v63
    %1653 = vmatprep.subr.mxu0 0.0
    %1654 = vmatpush1.msra.mxu0 0.0
    %1655 = vmatprep.subr.mxu0 0.0
    %1656 = vmatpush1.msra.mxu0 0.0
    %1657 = vmatprep.subr.mxu0 0.0
    %1658 = vmatpush1.msra.mxu0 0.0
    %1659 = vmatprep.subr.mxu0 0.0
    %1660 = vmatpush1.msra.mxu0 0.0
    %1661 = vmatprep.subr.mxu0 0.0
    %1662 = vmatpush1.msra.mxu0 0.0
    %1663 = vmatprep.subr.mxu0 0.0
    %1664 = vmatpush1.msra.mxu0 0.0
    %1665 = vmatprep.subr.mxu0 0.0
    %1666 = vmatpush1.msra.mxu0 0.0
    %1667 = vmatprep.subr.mxu0 0.0
    %1668 = vmatpush1.msra.mxu0 0.0
    %1669 = vmatprep.subr.mxu0 0.0
    %1670 = vmatpush1.msra.mxu0 0.0
    %1671 = vmatprep.subr.mxu0 0.0
    %1672 = vmatpush1.msra.mxu0 0.0
    %1673 = vmatprep.subr.mxu0 0.0
    %1674 = vmatpush1.msra.mxu0 0.0
    %1675 = vmatprep.subr.mxu0 0.0
    %1676 = vmatpush1.msra.mxu0 0.0
    %1677 = vmatprep.subr.mxu0 0.0
    %1678 = vmatpush1.msra.mxu0 0.0
    %1679 = vmatprep.subr.mxu0 0.0
    %1680 = vmatpush1.msra.mxu0 0.0
    %1681 = vmatprep.subr.mxu0 0.0
    %1682 = vmatpush1.msra.mxu0 0.0
    %1683 = vmatprep.subr.mxu0 0.0
    %1684 = vmatpush1.msra.mxu0 0.0
    %1685 = vmatprep.subr.mxu0 0.0
    %1686 = vmatpush1.msra.mxu0 0.0
    %1687 = vmatprep.subr.mxu0 0.0
    %1688 = vmatpush1.msra.mxu0 0.0
    %1689 = vmatprep.subr.mxu0 0.0
    %1690 = vmatpush1.msra.mxu0 0.0
    %1691 = vmatprep.subr.mxu0 0.0
    %1692 = vmatpush1.msra.mxu0 0.0
    %1693 = vmatprep.subr.mxu0 0.0
    %1694 = vmatpush1.msra.mxu0 0.0
    %1695 = vmatprep.subr.mxu0 0.0
    %1696 = vmatpush1.msra.mxu0 0.0
    %1697 = vmatprep.subr.mxu0 0.0
    %1698 = vmatpush1.msra.mxu0 0.0
    %1699 = vmatprep.subr.mxu0 0.0
    %1700 = vmatpush1.msra.mxu0 0.0
    %1701 = vmatprep.subr.mxu0 0.0
    %1702 = vmatpush1.msra.mxu0 0.0
    %1703 = vmatprep.subr.mxu0 0.0
    %1704 = vmatpush1.msra.mxu0 0.0
    %1705 = vmatprep.subr.mxu0 0.0
    %1706 = vmatpush1.msra.mxu0 0.0
    %1707 = vmatprep.subr.mxu0 0.0
    %1708 = vmatpush1.msra.mxu0 0.0
    %1709 = vmatprep.subr.mxu0 0.0
    %1710 = vmatpush1.msra.mxu0 0.0
    %1711 = vmatprep.subr.mxu0 0.0
    %1712 = vmatpush1.msra.mxu0 0.0
    %1713 = vmatprep.mubr.f32.mxu0 0.0
    %1714 = vmatmul.mubr.f32.gmra.mrb[0].mxu0 %v1647
    %v1715 = vpop.f32.mrb[0].mxu0
    %v1716 = vadd.f32 0.0, %v1715
    %v1717 = vpop.f32.mrb[0].mxu0
    %1718 = vdwg.mxu0
    %v1719 = vsel %vm765, %v1205, 0
    %1721 = vmatprep.subr.mxu0 0.0
    %1722 = vmatpush1.msra.mxu0 %v64
    %1723 = vmatprep.subr.mxu0 0.0
    %1724 = vmatpush1.msra.mxu0 %v65
    %1725 = vmatprep.subr.mxu0 0.0
    %1726 = vmatpush1.msra.mxu0 0.0
    %1727 = vmatprep.subr.mxu0 0.0
    %1728 = vmatpush1.msra.mxu0 0.0
    %1729 = vmatprep.subr.mxu0 0.0
    %1730 = vmatpush1.msra.mxu0 0.0
    %1731 = vmatprep.subr.mxu0 0.0
    %1732 = vmatpush1.msra.mxu0 0.0
    %1733 = vmatprep.subr.mxu0 0.0
    %1734 = vmatpush1.msra.mxu0 0.0
    %1735 = vmatprep.subr.mxu0 0.0
    %1736 = vmatpush1.msra.mxu0 0.0
    %1737 = vmatprep.subr.mxu0 0.0
    %1738 = vmatpush1.msra.mxu0 0.0
    %1739 = vmatprep.subr.mxu0 0.0
    %1740 = vmatpush1.msra.mxu0 0.0
    %1741 = vmatprep.subr.mxu0 0.0
    %1742 = vmatpush1.msra.mxu0 0.0
    %1743 = vmatprep.subr.mxu0 0.0
    %1744 = vmatpush1.msra.mxu0 0.0
    %1745 = vmatprep.subr.mxu0 0.0
    %1746 = vmatpush1.msra.mxu0 0.0
    %1747 = vmatprep.subr.mxu0 0.0
    %1748 = vmatpush1.msra.mxu0 0.0
    %1749 = vmatprep.subr.mxu0 0.0
    %1750 = vmatpush1.msra.mxu0 0.0
    %1751 = vmatprep.subr.mxu0 0.0
    %1752 = vmatpush1.msra.mxu0 0.0
    %1753 = vmatprep.subr.mxu0 0.0
    %1754 = vmatpush1.msra.mxu0 0.0
    %1755 = vmatprep.subr.mxu0 0.0
    %1756 = vmatpush1.msra.mxu0 0.0
    %1757 = vmatprep.subr.mxu0 0.0
    %1758 = vmatpush1.msra.mxu0 0.0
    %1759 = vmatprep.subr.mxu0 0.0
    %1760 = vmatpush1.msra.mxu0 0.0
    %1761 = vmatprep.subr.mxu0 0.0
    %1762 = vmatpush1.msra.mxu0 0.0
    %1763 = vmatprep.subr.mxu0 0.0
    %1764 = vmatpush1.msra.mxu0 0.0
    %1765 = vmatprep.subr.mxu0 0.0
    %1766 = vmatpush1.msra.mxu0 0.0
    %1767 = vmatprep.subr.mxu0 0.0
    %1768 = vmatpush1.msra.mxu0 0.0
    %1769 = vmatprep.subr.mxu0 0.0
    %1770 = vmatpush1.msra.mxu0 0.0
    %1771 = vmatprep.subr.mxu0 0.0
    %1772 = vmatpush1.msra.mxu0 0.0
    %1773 = vmatprep.subr.mxu0 0.0
    %1774 = vmatpush1.msra.mxu0 0.0
    %1775 = vmatprep.subr.mxu0 0.0
    %1776 = vmatpush1.msra.mxu0 0.0
    %1777 = vmatprep.subr.mxu0 0.0
    %1778 = vmatpush1.msra.mxu0 0.0
    %1779 = vmatprep.subr.mxu0 0.0
    %1780 = vmatpush1.msra.mxu0 0.0
    %1781 = vmatprep.subr.mxu0 0.0
    %1782 = vmatpush1.msra.mxu0 0.0
    %1783 = vmatprep.subr.mxu0 0.0
    %1784 = vmatpush1.msra.mxu0 0.0
    %1785 = vmatprep.mubr.f32.mxu0 0.0
    %1786 = vmatmul.mubr.f32.gmra.mrb[0].mxu0 %v1719
    %v1787 = vpop.f32.mrb[0].mxu0
    %v1788 = vadd.f32 0.0, %v1787
    %v1789 = vpop.f32.mrb[0].mxu0
    %1790 = vdwg.mxu0
    %v1799 = vrot.slane %v1356, 7
    %v1800 = vsel %vm750, %v1799, %v1284
    %v1801 = vrot.slane %v1428, 6
    %v1802 = vsel %vm752, %v1801, %v1800
    %v1803 = vrot.slane %v1500, 5
    %v1804 = vsel %vm754, %v1803, %v1802
    %v1805 = vrot.slane %v1572, 4
    %v1806 = vsel %vm756, %v1805, %v1804
    %v1807 = vrot.slane %v1644, 3
    %v1808 = vsel %vm758, %v1807, %v1806
    %v1809 = vrot.slane %v1716, 2
    %v1810 = vsel %vm760, %v1809, %v1808
    %v1811 = vrot.slane %v1788, 1
    %v1812 = vsel %vm762, %v1811, %v1810
    %1815 = vrot.lane.b32.xlu0 %v158, 64
    %v1816 = vpop.permute.xlu0 %1815
    %v1818 = vsel %vm169, %v1812, %v1816
    %v1819 = vld [vmem:[%s8] sm:$0xff]
    %v1820 = vld [vmem:[%s8 + $0x8] sm:$0xff]
    %v1821 = vld [vmem:[%s8 + $0x10] sm:$0xff]
    %v1822 = vld [vmem:[%s8 + $0x18] sm:$0xff]
    %v1823 = vld [vmem:[%s8 + $0x20] sm:$0xff]
    %v1824 = vld [vmem:[%s8 + $0x28] sm:$0xff]
    %v1825 = vld [vmem:[%s8 + $0x30] sm:$0xff]
    %v1826 = vld [vmem:[%s8 + $0x38] sm:$0xff]
    %v1827 = vld [vmem:[%s8 + $0x40] sm:$0xff]
    %v1828 = vld [vmem:[%s8 + $0x48] sm:$0xff]
    %v1829 = vld [vmem:[%s8 + $0x50] sm:$0xff]
    %v1830 = vld [vmem:[%s8 + $0x58] sm:$0xff]
    %v1831 = vld [vmem:[%s8 + $0x60] sm:$0xff]
    %v1832 = vld [vmem:[%s8 + $0x68] sm:$0xff]
    %v1833 = vld [vmem:[%s8 + $0x70] sm:$0xff]
    %v1834 = vld [vmem:[%s8 + $0x78] sm:$0xff]
    %v1835 = vld [vmem:[%s8 + $0x80] sm:$0xff]
    %v1836 = vld [vmem:[%s8 + $0x88] sm:$0xff]
    %v1837 = vld [vmem:[%s8 + $0x90] sm:$0xff]
    %v1838 = vld [vmem:[%s8 + $0x98] sm:$0xff]
    %v1839 = vld [vmem:[%s8 + $0xa0] sm:$0xff]
    %v1840 = vld [vmem:[%s8 + $0xa8] sm:$0xff]
    %v1841 = vld [vmem:[%s8 + $0xb0] sm:$0xff]
    %v1842 = vld [vmem:[%s8 + $0xb8] sm:$0xff]
    %v1843 = vld [vmem:[%s8 + $0xc0] sm:$0xff]
    %v1844 = vld [vmem:[%s8 + $0xc8] sm:$0xff]
    %v1845 = vld [vmem:[%s8 + $0xd0] sm:$0xff]
    %v1846 = vld [vmem:[%s8 + $0xd8] sm:$0xff]
    %v1847 = vld [vmem:[%s8 + $0xe0] sm:$0xff]
    %v1848 = vld [vmem:[%s8 + $0xe8] sm:$0xff]
    %v1849 = vld [vmem:[%s8 + $0xf0] sm:$0xff]
    %v1850 = vld [vmem:[%s8 + $0xf8] sm:$0xff]
    %1851 = vmatprep.subr.mxu0 %v1820
    %1852 = vmatpush1.msra.mxu0 %v1819
    %1853 = vmatprep.subr.mxu0 %v1822
    %1854 = vmatpush1.msra.mxu0 %v1821
    %1855 = vmatprep.subr.mxu0 %v1824
    %1856 = vmatpush1.msra.mxu0 %v1823
    %1857 = vmatprep.subr.mxu0 %v1826
    %1858 = vmatpush1.msra.mxu0 %v1825
    %1859 = vmatprep.subr.mxu0 %v1828
    %1860 = vmatpush1.msra.mxu0 %v1827
    %1861 = vmatprep.subr.mxu0 %v1830
    %1862 = vmatpush1.msra.mxu0 %v1829
    %1863 = vmatprep.subr.mxu0 %v1832
    %1864 = vmatpush1.msra.mxu0 %v1831
    %1865 = vmatprep.subr.mxu0 %v1834
    %1866 = vmatpush1.msra.mxu0 %v1833
    %1867 = vmatprep.subr.mxu0 %v1836
    %1868 = vmatpush1.msra.mxu0 %v1835
    %1869 = vmatprep.subr.mxu0 %v1838
    %1870 = vmatpush1.msra.mxu0 %v1837
    %1871 = vmatprep.subr.mxu0 %v1840
    %1872 = vmatpush1.msra.mxu0 %v1839
    %1873 = vmatprep.subr.mxu0 %v1842
    %1874 = vmatpush1.msra.mxu0 %v1841
    %1875 = vmatprep.subr.mxu0 %v1844
    %1876 = vmatpush1.msra.mxu0 %v1843
    %1877 = vmatprep.subr.mxu0 %v1846
    %1878 = vmatpush1.msra.mxu0 %v1845
    %1879 = vmatprep.subr.mxu0 %v1848
    %1880 = vmatpush1.msra.mxu0 %v1847
    %1881 = vmatprep.subr.mxu0 %v1850
    %1882 = vmatpush1.msra.mxu0 %v1849
    %1883 = vmatprep.subr.mxu0 0.0
    %1884 = vmatpush1.msra.mxu0 0.0
    %1885 = vmatprep.subr.mxu0 0.0
    %1886 = vmatpush1.msra.mxu0 0.0
    %1887 = vmatprep.subr.mxu0 0.0
    %1888 = vmatpush1.msra.mxu0 0.0
    %1889 = vmatprep.subr.mxu0 0.0
    %1890 = vmatpush1.msra.mxu0 0.0
    %1891 = vmatprep.subr.mxu0 0.0
    %1892 = vmatpush1.msra.mxu0 0.0
    %1893 = vmatprep.subr.mxu0 0.0
    %1894 = vmatpush1.msra.mxu0 0.0
    %1895 = vmatprep.subr.mxu0 0.0
    %1896 = vmatpush1.msra.mxu0 0.0
    %1897 = vmatprep.subr.mxu0 0.0
    %1898 = vmatpush1.msra.mxu0 0.0
    %1899 = vmatprep.subr.mxu0 0.0
    %1900 = vmatpush1.msra.mxu0 0.0
    %1901 = vmatprep.subr.mxu0 0.0
    %1902 = vmatpush1.msra.mxu0 0.0
    %1903 = vmatprep.subr.mxu0 0.0
    %1904 = vmatpush1.msra.mxu0 0.0
    %1905 = vmatprep.subr.mxu0 0.0
    %1906 = vmatpush1.msra.mxu0 0.0
    %1907 = vmatprep.subr.mxu0 0.0
    %1908 = vmatpush1.msra.mxu0 0.0
    %1909 = vmatprep.subr.mxu0 0.0
    %1910 = vmatpush1.msra.mxu0 0.0
    %1911 = vmatprep.subr.mxu0 0.0
    %1912 = vmatpush1.msra.mxu0 0.0
    %1913 = vmatprep.subr.mxu0 0.0
    %1914 = vmatpush1.msra.mxu0 0.0
    %1915 = vmatprep.mubr.f32.mxu0 0.0
    %1916 = vmatmul.mubr.f32.gmra.mrb[0].mxu0 %v1818
    %v1917 = vpop.f32.mrb[0].mxu0
    %v1918 = vadd.f32 0.0, %v1917
    %v1919 = vpop.f32.mrb[0].mxu0
    %v1920 = vadd.f32 0.0, %v1919
    %1921 = vdwg.mxu0
    %v1922 = vld [vmem:[%s9] sm:$0xff]
    %v1923 = vld [vmem:[%s9 + $0x8] sm:$0xff]
    %v1924 = vld [vmem:[%s9 + $0x10] sm:$0xff]
    %v1925 = vld [vmem:[%s9 + $0x18] sm:$0xff]
    %v1926 = vld [vmem:[%s9 + $0x20] sm:$0xff]
    %v1927 = vld [vmem:[%s9 + $0x28] sm:$0xff]
    %v1928 = vld [vmem:[%s9 + $0x30] sm:$0xff]
    %v1929 = vld [vmem:[%s9 + $0x38] sm:$0xff]
    %v1930 = vld [vmem:[%s9 + $0x40] sm:$0xff]
    %v1931 = vld [vmem:[%s9 + $0x48] sm:$0xff]
    %v1932 = vld [vmem:[%s9 + $0x50] sm:$0xff]
    %v1933 = vld [vmem:[%s9 + $0x58] sm:$0xff]
    %v1934 = vld [vmem:[%s9 + $0x60] sm:$0xff]
    %v1935 = vld [vmem:[%s9 + $0x68] sm:$0xff]
    %v1936 = vld [vmem:[%s9 + $0x70] sm:$0xff]
    %v1937 = vld [vmem:[%s9 + $0x78] sm:$0xff]
    %v1938 = vld [vmem:[%s10] sm:$0x3]
    %v1940 = vlaneseq
    %v1941 = vshrl.u32 %v1940, 7
    %v1942 = vsub.s32 0, %v1941
    %v1943 = vrot.slane %v1938, %v1942
    %v1944 = vlaneseq
    %v1945 = vshrl.u32 %v1944, 7
    %v1946 = vsub.s32 1, %v1945
    %v1947 = vrot.slane %v1938, %v1946
    %1950 = vmatprep.subr.mxu0 %v1923
    %1951 = vmatpush1.msra.mxu0 %v1922
    %1952 = vmatprep.subr.mxu0 %v1925
    %1953 = vmatpush1.msra.mxu0 %v1924
    %1954 = vmatprep.subr.mxu0 %v1927
    %1955 = vmatpush1.msra.mxu0 %v1926
    %1956 = vmatprep.subr.mxu0 %v1929
    %1957 = vmatpush1.msra.mxu0 %v1928
    %1958 = vmatprep.subr.mxu0 %v1931
    %1959 = vmatpush1.msra.mxu0 %v1930
    %1960 = vmatprep.subr.mxu0 %v1933
    %1961 = vmatpush1.msra.mxu0 %v1932
    %1962 = vmatprep.subr.mxu0 %v1935
    %1963 = vmatpush1.msra.mxu0 %v1934
    %1964 = vmatprep.subr.mxu0 %v1937
    %1965 = vmatpush1.msra.mxu0 %v1936
    %1966 = vmatprep.subr.mxu0 0.0
    %1967 = vmatpush1.msra.mxu0 0.0
    %1968 = vmatprep.subr.mxu0 0.0
    %1969 = vmatpush1.msra.mxu0 0.0
    %1970 = vmatprep.subr.mxu0 0.0
    %1971 = vmatpush1.msra.mxu0 0.0
    %1972 = vmatprep.subr.mxu0 0.0
    %1973 = vmatpush1.msra.mxu0 0.0
    %1974 = vmatprep.subr.mxu0 0.0
    %1975 = vmatpush1.msra.mxu0 0.0
    %1976 = vmatprep.subr.mxu0 0.0
    %1977 = vmatpush1.msra.mxu0 0.0
    %1978 = vmatprep.subr.mxu0 0.0
    %1979 = vmatpush1.msra.mxu0 0.0
    %1980 = vmatprep.subr.mxu0 0.0
    %1981 = vmatpush1.msra.mxu0 0.0
    %1982 = vmatprep.subr.mxu0 0.0
    %1983 = vmatpush1.msra.mxu0 0.0
    %1984 = vmatprep.subr.mxu0 0.0
    %1985 = vmatpush1.msra.mxu0 0.0
    %1986 = vmatprep.subr.mxu0 0.0
    %1987 = vmatpush1.msra.mxu0 0.0
    %1988 = vmatprep.subr.mxu0 0.0
    %1989 = vmatpush1.msra.mxu0 0.0
    %1990 = vmatprep.subr.mxu0 0.0
    %1991 = vmatpush1.msra.mxu0 0.0
    %1992 = vmatprep.subr.mxu0 0.0
    %1993 = vmatpush1.msra.mxu0 0.0
    %1994 = vmatprep.subr.mxu0 0.0
    %1995 = vmatpush1.msra.mxu0 0.0
    %1996 = vmatprep.subr.mxu0 0.0
    %1997 = vmatpush1.msra.mxu0 0.0
    %1998 = vmatprep.subr.mxu0 0.0
    %1999 = vmatpush1.msra.mxu0 0.0
    %2000 = vmatprep.subr.mxu0 0.0
    %2001 = vmatpush1.msra.mxu0 0.0
    %2002 = vmatprep.subr.mxu0 0.0
    %2003 = vmatpush1.msra.mxu0 0.0
    %2004 = vmatprep.subr.mxu0 0.0
    %2005 = vmatpush1.msra.mxu0 0.0
    %2006 = vmatprep.subr.mxu0 0.0
    %2007 = vmatpush1.msra.mxu0 0.0
    %2008 = vmatprep.subr.mxu0 0.0
    %2009 = vmatpush1.msra.mxu0 0.0
    %2010 = vmatprep.subr.mxu0 0.0
    %2011 = vmatpush1.msra.mxu0 0.0
    %2012 = vmatprep.subr.mxu0 0.0
    %2013 = vmatpush1.msra.mxu0 0.0
    %2014 = vmatprep.mubr.f32.mxu0 0.0
    %2015 = vmatmul.mubr.f32.gmra.mrb[0].mxu0 %v171
    %v2016 = vpop.f32.mrb[0].mxu0
    %v2017 = vadd.f32 %v1943, %v2016
    %v2018 = vpop.f32.mrb[0].mxu0
    %v2019 = vadd.f32 %v1947, %v2018
    %2020 = vdwg.mxu0
    %v2021 = vadd.f32 %v1918, %v2017
    %v2022 = vxor.u32 %v2021, 2147483648
    %v2023 = vmul.f32 %v2022, 1.442695
    %v2024 = vpow.pop %v2023
    %v2025 = vadd.f32 %v2024, 1.0
    %v2026 = vrcp.pop %v2025
    %v2027 = vmul.f32 1.0, %v2026
    %2029 = vrot.lane.b32.xlu0 %v2019, 64
    %v2030 = vpop.permute.xlu0 %2029
    %v2032 = vmul.f32 %v2027, %v2030
    %2034 = vrot.lane.b32.xlu0 %v2032, 64
    %v2035 = vpop.permute.xlu0 %2034
    %v2037 = vadd.f32 %v1920, %v2035
    %v2038 = vtanh.pop %v2037
    %v2039 = vsub.f32 1.0, %v2027
    %v2040 = vmul.f32 %v2039, %v2038
    %v2041 = vmul.f32 %v2027, %v49
    %v2042 = vadd.f32 %v2040, %v2041
    %2043 = vst.msk [vmem:[%s14] sm:$0xff] %vm169, %v2042
    %v2044 = vld [vmem:[%s11] sm:$0xff]
    %v2045 = vld [vmem:[%s11 + $0x8] sm:$0xff]
    %v2046 = vld [vmem:[%s11 + $0x10] sm:$0xff]
    %v2047 = vld [vmem:[%s11 + $0x18] sm:$0xff]
    %v2048 = vld [vmem:[%s11 + $0x20] sm:$0xff]
    %v2049 = vld [vmem:[%s11 + $0x28] sm:$0xff]
    %v2050 = vld [vmem:[%s11 + $0x30] sm:$0xff]
    %v2051 = vld [vmem:[%s11 + $0x38] sm:$0xff]
    %v2052 = vld [vmem:[%s12] sm:$0x1]
    %v2054 = vlaneseq
    %v2055 = vshrl.u32 %v2054, 7
    %v2056 = vsub.s32 0, %v2055
    %v2057 = vrot.slane %v2052, %v2056
    %v2060 = vsel %vm169, %v2042, 0
    %2062 = vmatprep.subr.mxu0 0.0
    %2063 = vmatpush1.msra.mxu0 %v2044
    %2064 = vmatprep.subr.mxu0 0.0
    %2065 = vmatpush1.msra.mxu0 %v2045
    %2066 = vmatprep.subr.mxu0 0.0
    %2067 = vmatpush1.msra.mxu0 %v2046
    %2068 = vmatprep.subr.mxu0 0.0
    %2069 = vmatpush1.msra.mxu0 %v2047
    %2070 = vmatprep.subr.mxu0 0.0
    %2071 = vmatpush1.msra.mxu0 %v2048
    %2072 = vmatprep.subr.mxu0 0.0
    %2073 = vmatpush1.msra.mxu0 %v2049
    %2074 = vmatprep.subr.mxu0 0.0
    %2075 = vmatpush1.msra.mxu0 %v2050
    %2076 = vmatprep.subr.mxu0 0.0
    %2077 = vmatpush1.msra.mxu0 %v2051
    %2078 = vmatprep.subr.mxu0 0.0
    %2079 = vmatpush1.msra.mxu0 0.0
    %2080 = vmatprep.subr.mxu0 0.0
    %2081 = vmatpush1.msra.mxu0 0.0
    %2082 = vmatprep.subr.mxu0 0.0
    %2083 = vmatpush1.msra.mxu0 0.0
    %2084 = vmatprep.subr.mxu0 0.0
    %2085 = vmatpush1.msra.mxu0 0.0
    %2086 = vmatprep.subr.mxu0 0.0
    %2087 = vmatpush1.msra.mxu0 0.0
    %2088 = vmatprep.subr.mxu0 0.0
    %2089 = vmatpush1.msra.mxu0 0.0
    %2090 = vmatprep.subr.mxu0 0.0
    %2091 = vmatpush1.msra.mxu0 0.0
    %2092 = vmatprep.subr.mxu0 0.0
    %2093 = vmatpush1.msra.mxu0 0.0
    %2094 = vmatprep.subr.mxu0 0.0
    %2095 = vmatpush1.msra.mxu0 0.0
    %2096 = vmatprep.subr.mxu0 0.0
    %2097 = vmatpush1.msra.mxu0 0.0
    %2098 = vmatprep.subr.mxu0 0.0
    %2099 = vmatpush1.msra.mxu0 0.0
    %2100 = vmatprep.subr.mxu0 0.0
    %2101 = vmatpush1.msra.mxu0 0.0
    %2102 = vmatprep.subr.mxu0 0.0
    %2103 = vmatpush1.msra.mxu0 0.0
    %2104 = vmatprep.subr.mxu0 0.0
    %2105 = vmatpush1.msra.mxu0 0.0
    %2106 = vmatprep.subr.mxu0 0.0
    %2107 = vmatpush1.msra.mxu0 0.0
    %2108 = vmatprep.subr.mxu0 0.0
    %2109 = vmatpush1.msra.mxu0 0.0
    %2110 = vmatprep.subr.mxu0 0.0
    %2111 = vmatpush1.msra.mxu0 0.0
    %2112 = vmatprep.subr.mxu0 0.0
    %2113 = vmatpush1.msra.mxu0 0.0
    %2114 = vmatprep.subr.mxu0 0.0
    %2115 = vmatpush1.msra.mxu0 0.0
    %2116 = vmatprep.subr.mxu0 0.0
    %2117 = vmatpush1.msra.mxu0 0.0
    %2118 = vmatprep.subr.mxu0 0.0
    %2119 = vmatpush1.msra.mxu0 0.0
    %2120 = vmatprep.subr.mxu0 0.0
    %2121 = vmatpush1.msra.mxu0 0.0
    %2122 = vmatprep.subr.mxu0 0.0
    %2123 = vmatpush1.msra.mxu0 0.0
    %2124 = vmatprep.subr.mxu0 0.0
    %2125 = vmatpush1.msra.mxu0 0.0
    %2126 = vmatprep.mubr.f32.mxu0 0.0
    %2127 = vmatmul.mubr.f32.gmra.mrb[0].mxu0 %v2060
    %v2128 = vpop.f32.mrb[0].mxu0
    %v2129 = vadd.f32 %v2057, %v2128
    %v2130 = vpop.f32.mrb[0].mxu0
    %2131 = vdwg.mxu0
    %2132 = vst [vmem:[#allocation2] sm:$0xff] %v2129
    // Predicated region
    $region54: #{attention_decoder_step.1} parent=1 // pred_check
      _
    $region55: #{attention_decoder_step.1} parent=1 // pred_check_branch
      %2134 = sbr.rel (0) target = $region57
    $region56: #{attention_decoder_step.1} parent=1 // pred_region
      %s2136 = ssub.s32 128, 128
      %2137 = vsyncadd [#allocation3], %s2136
      %s2139 = sshll.u32 [#allocation2], 4
      %s2140 = int_to_ptr.vmem [resolvable:$true] %s2139
      %2142 = dma.vmem_to_hbm [thread:$0]  %s2140, 128, %s13, [#allocation3]
    $region57: #{attention_decoder_step.1} parent=1 // pred_fallthru
      _
    // Predicated region
    $region58: #{attention_decoder_step.1} parent=1 // pred_check
      _
    $region59: #{attention_decoder_step.1} parent=1 // pred_check_branch
      %2144 = sbr.rel (0) target = $region61
    $region60: #{attention_decoder_step.1} parent=1 // pred_region
      _
    $region61: #{attention_decoder_step.1} parent=1 // pred_fallthru
      _
    // Predicated region
    $region62: #{attention_decoder_step.1} parent=1 // pred_check
      _
    $region63: #{attention_decoder_step.1} parent=1 // pred_check_branch
      %2146 = sbr.rel (0) target = $region65
    $region64: #{attention_decoder_step.1} parent=1 // pred_region
      %s2148 = ssub.s32 128, 128
      %2149 = vsyncadd [#allocation5], %s2148
      %s2151 = sshll.u32 [#allocation4], 4
      %s2152 = int_to_ptr.vmem [resolvable:$true] %s2151
      %2154 = dma.vmem_to_hbm [thread:$0]  %s2152, 128, %s15, [#allocation5]
    $region65: #{attention_decoder_step.1} parent=1 // pred_fallthru
      _
    // Predicated region
    $region66: #{attention_decoder_step.1} parent=1 // pred_check
      _
    $region67: #{attention_decoder_step.1} parent=1 // pred_check_branch
      %2156 = sbr.rel (0) target = $region69
    $region68: #{attention_decoder_step.1} parent=1 // pred_region
      %2157 = dma.done [#allocation3], 128
    $region69: #{attention_decoder_step.1} parent=1 // pred_fallthru
      _
    // Predicated region
    $region70: #{attention_decoder_step.1} parent=1 // pred_check
      _
    $region71: #{attention_decoder_step.1} parent=1 // pred_check_branch
      %2159 = sbr.rel (0) target = $region73
    $region72: #{attention_decoder_step.1} parent=1 // pred_region
      _
    $region73: #{attention_decoder_step.1} parent=1 // pred_fallthru
      _
    // Predicated region
    $region74: #{attention_decoder_step.1} parent=1 // pred_check
      _
    $region75: #{attention_decoder_step.1} parent=1 // pred_check_branch
      %2161 = sbr.rel (0) target = $region77
    $region76: #{attention_decoder_step.1} parent=1 // pred_region
      %2162 = dma.done [#allocation5], 128
    $region77: #{attention_decoder_step.1} parent=1 // pred_fallthru
      _
    %2163 = vsyncpa [#allocation3], 1
    %2164 = vsyncpa [#allocation5], 1

</llo_original>
